<compile_context>
chip_gen: v5e
topology: v5e:2x2
jax: 0.10.0
libtpu: 0.0.40
codegen_flags: <defaults>
</compile_context>

<pallas_src>
import functools

import jax
import jax.numpy as jnp
from jax.experimental import pallas as pl
from jax.experimental.pallas import tpu as pltpu

# Synthetic model hyper-parameters (3-channel image detector head).
CIN = 3              # input image channels
COUT = 8             # RepVGG block output channels
NC = 3               # number of classes
NO = 5 + NC          # detect-head outputs per spatial location
LANE = 128           # TPU lane width
DEFAULT_TILE = 8192  # output positions per grid step (amortizes ~0.35us/step)
DEFAULT_CHUNK = 1024 # inner unroll width (bounds live vregs / f32 acc size)


def _round_up(x, m):
    return ((x + m - 1) // m) * m


def detect_kernel(x_ref, w3_ref, b3_ref, w1_ref, b1_ref, o_ref, *,
                  tile, chunk, wp):
    """One (batch, row-tile) grid step, channel-first / lane-dense layout.

    x_ref : (CIN, IN_LEN)   bf16 flattened, zero-padded image with 128-aligned
                            row stride `wp` (resident across the tile axis)
    w3_ref: (9, COUT, CIN)  bf16 fused RepVGG 3x3 weight, tap-major (dy, dx)
    b3_ref: (COUT, 1)       f32 fused conv bias
    w1_ref: (NO, COUT)      bf16 1x1 detect-head weight (transposed)
    b1_ref: (NO, 1)         f32 head bias
    o_ref : (NO, tile)      bf16 sigmoid predictions, lane-dense
    """
    t = pl.program_id(1)
    nchunks = tile // chunk
    span = chunk + 2 * wp          # lanes covered by the 3 dy taps of a chunk
    wlen = span + LANE             # + lane-aligned slack for the dx={1,2} shift

    # Hoisted broadcasts (JAX does not CSE broadcast_in_dim inside loops).
    b3 = jnp.broadcast_to(b3_ref[...], (COUT, chunk))
    b1 = jnp.broadcast_to(b1_ref[...], (NO, chunk))
    w1 = w1_ref[...]

    # Inner chunk loop: keeps the f32 accumulator and epilogue at (*, chunk)
    # so live vregs stay small while the grid step stays big.
    for ci in range(nchunks):
        base = pl.multiple_of(t * tile + ci * chunk, LANE)
        # One lane-aligned window load covering this chunk plus the 3x3 halo.
        win = x_ref[:, pl.ds(base, wlen)]                  # (CIN, wlen) bf16

        # 3x3 conv: `wp` is a multiple of 128, so the dy*wp tap offsets are
        # lane-aligned; only dx in {1, 2} needs a lane shift (2 per chunk).
        acc = jnp.zeros((COUT, chunk), jnp.float32)
        for dx in range(3):
            xs = win[:, dx:dx + span]                      # dx=0 is free
            for dy in range(3):
                tap = xs[:, dy * wp:dy * wp + chunk]       # lane-aligned view
                acc = acc + jnp.dot(w3_ref[dy * 3 + dx], tap,
                                    preferred_element_type=jnp.float32)

        # RepVGGBlock.switch_to_deploy(): fused conv bias + ReLU (f32 epilogue).
        h = jnp.maximum(acc + b3, 0.0)                     # (COUT, chunk)

        # Detect head: 1x1 conv (channel matmul) + bias.
        y = jnp.dot(w1, h.astype(jnp.bfloat16),
                    preferred_element_type=jnp.float32) + b1

        # sigmoid = 1 / (1 + exp(-y)); exp + approx reciprocal use the EUP slot.
        # The min(.,1) clamp is kept (one 8-vreg VPU pass) because downstream
        # asserts require a hard <=1 bound on the bf16 cast path.
        s = pl.reciprocal(1.0 + jnp.exp(-y), approx=True)
        o_ref[:, ci * chunk:(ci + 1) * chunk] = jnp.minimum(s, 1.0).astype(
            o_ref.dtype)


class DetectMultiBackendPallas:
    """JAX/Pallas stand-in for yolov6.utils.infer_utils.DetectMultiBackend.

    Only the PyTorch ('pt') backend path is realized as real compute; the
    jit/onnx/engine paths are external-runtime plumbing with no TPU-kernel
    equivalent.
    """

    def __init__(self, key, fp16=False, tile=DEFAULT_TILE, chunk=DEFAULT_CHUNK):
        # Backend flags (mirrors _model_type() result for a '.pt' weight).
        self.pt, self.jit, self.onnx, self.engine = True, False, False, False
        self.fp16_flag = fp16
        self.fp16 = fp16 and self.pt
        self.stride = 32
        assert tile % chunk == 0 and chunk % LANE == 0 and tile % LANE == 0
        self.tile = tile
        self.chunk = chunk

        k1, k2, k3, k4 = jax.random.split(key, 4)
        # Fused RepVGG 3x3 conv weight as (9, CIN, COUT); leading axis is the
        # (dy, dx) tap, row-major (reorder of PyTorch's (COUT, CIN, 3, 3)).
        self.w3 = jax.random.normal(k1, (9, CIN, COUT), jnp.float32) * 0.1
        self.b3 = jax.random.normal(k2, (COUT,), jnp.float32) * 0.1
        self.w1 = jax.random.normal(k3, (COUT, NO), jnp.float32) * 0.1
        self.b1 = jax.random.normal(k4, (NO,), jnp.float32) * 0.1

        # Channel-first / lane-dense operand layouts consumed by the kernel.
        # Matmul weights travel as bf16; biases stay f32 for the f32 epilogue.
        self.w3_cf = jnp.transpose(self.w3, (0, 2, 1)).astype(jnp.bfloat16)
        self.b3_cf = self.b3.reshape(COUT, 1)
        self.w1_cf = self.w1.T.astype(jnp.bfloat16)
        self.b1_cf = self.b1.reshape(NO, 1)

        # TODO(synk): jit / onnxruntime / TensorRT engine deserialization,
        # checkpoint loading and warmup() are host-side runtime plumbing with
        # no Pallas equivalent; only the 'pt' compute path is implemented.

    # ---- the synthetic backend model (what self.model(im) would return) ----
    def _model(self, im_nchw):
        B, C, H, W = im_nchw.shape
        assert C == CIN
        wp = _round_up(W + 2, LANE)      # 128-aligned padded row stride
        n_pos = H * wp                   # flattened output grid (incl. pad cols)

        # Grid-step width (tile) and inner unroll width (chunk); small inputs
        # drop to 2 tiles x 2 chunks so the multi-tile/multi-chunk path (halo
        # handling, tail padding) is still exercised.
        if n_pos >= 2 * self.tile:
            tile, chunk = self.tile, self.chunk
        else:
            chunk = min(self.chunk, 512)
            tile = max(chunk, _round_up(max(n_pos // 2, 1), chunk))
        g = _round_up(n_pos, tile)
        n_tiles = g // tile

        # Enough padded rows that every in-kernel window read is in bounds:
        # max read end = (g - chunk) + (chunk + 2*wp + 128) <= g + 3*wp.
        rows = -(-g // wp) + 3
        in_len = rows * wp

        # Host glue: ONE bf16 pad handles the 1px conv border, the 128-aligned
        # row stride and the tail rows; a reshape flattens the spatial dims.
        xp = jnp.pad(im_nchw.astype(jnp.bfloat16),
                     ((0, 0), (0, 0), (1, rows - H - 1), (1, wp - W - 1)))
        x_flat = xp.reshape(B, CIN, in_len)

        kern = functools.partial(detect_kernel, tile=tile, chunk=chunk, wp=wp)

        # VMEM budget: the resident (CIN, in_len) bf16 block is sublane-padded
        # to 16 rows and double-buffered; size the limit with headroom.
        x_blk = 16 * in_len * 2
        o_blk = 16 * tile * 2
        vmem_limit = min(100 * 2 ** 20,
                         max(32 * 2 ** 20, 2 * (x_blk + o_blk) + 2 * 2 ** 20))

        raw = pl.pallas_call(
            kern,
            out_shape=jax.ShapeDtypeStruct((B, NO, g), jnp.bfloat16),
            grid_spec=pltpu.PrefetchScalarGridSpec(
                num_scalar_prefetch=0,
                # Batch-major grid: megacore splits on batch first, so the two
                # cores do not duplicate the resident per-batch image DMA.
                grid=(B, n_tiles),
                in_specs=[
                    pl.BlockSpec((pl.Squeezed(), CIN, in_len),
                                 lambda b, t: (b, 0, 0)),
                    pl.BlockSpec((9, COUT, CIN), lambda b, t: (0, 0, 0)),
                    pl.BlockSpec((COUT, 1), lambda b, t: (0, 0)),
                    pl.BlockSpec((NO, COUT), lambda b, t: (0, 0)),
                    pl.BlockSpec((NO, 1), lambda b, t: (0, 0)),
                ],
                out_specs=pl.BlockSpec((pl.Squeezed(), NO, tile),
                                       lambda b, t: (b, 0, t)),
            ),
            compiler_params=pltpu.CompilerParams(
                dimension_semantics=("parallel", "parallel"),
                vmem_limit_bytes=vmem_limit),
        )(x_flat, self.w3_cf, self.b3_cf, self.w1_cf, self.b1_cf)

        # Glue: lane-aligned crop of the junk pad columns, then back to the
        # YOLO (B, H*W, NO) layout (XLA fuses the slice + transpose into one
        # pass over the bf16 output).  Note: outputs at the right pad columns
        # are computed with taps that wrap into the next padded row; they are
        # always cropped here — keep that invariant if the tiling changes.
        pred = raw[:, :, :n_pos].reshape(B, NO, H, wp)[:, :, :, :W]
        pred = pred.reshape(B, NO, H * W).transpose(0, 2, 1)
        # YOLO-style models return (predictions, feature_maps); wrapper uses [0].
        return (pred, None)

    # ---- DetectMultiBackend.forward semantics ------------------------------
    def forward(self, im, augment=False, visualize=False):
        b, ch, h, w = im.shape
        if self.pt:
            # Activations and outputs travel as bf16 inside the kernel (the
            # bf16 output halves the dominant HBM stream); the fp16 flag is
            # therefore a no-op on TPU beyond interface parity.
            y = self._model(im)[0]
        else:
            raise NotImplementedError("only the 'pt' backend is implemented")
        if isinstance(y, (list, tuple)):
            return self.from_numpy(y[0]) if len(y) == 1 else [
                self.from_numpy(x) for x in y]
        return self.from_numpy(y)

    @staticmethod
    def from_numpy(x):
        return jnp.asarray(x)

    __call__ = forward


# ---- pure-JAX reference of the synthetic 'pt' model (for validation) -------
def _reference(im, w3, b3, w1, b1):
    B, C, H, W = im.shape
    x = im.astype(jnp.bfloat16).astype(jnp.float32)
    xp = jnp.pad(x, ((0, 0), (0, 0), (1, 1), (1, 1)))
    w3f = w3.astype(jnp.bfloat16).astype(jnp.float32)
    h = jnp.zeros((B, COUT, H, W), jnp.float32)
    for dy in range(3):
        for dx in range(3):
            patch = xp[:, :, dy:dy + H, dx:dx + W]
            h = h + jnp.einsum('bchw,co->bohw', patch, w3f[dy * 3 + dx])
    h = jnp.maximum(h + b3.reshape(1, COUT, 1, 1), 0.0)
    hb = h.astype(jnp.bfloat16).astype(jnp.float32)
    w1f = w1.astype(jnp.bfloat16).astype(jnp.float32)
    y = jnp.einsum('bohw,on->bnhw', hb, w1f) + b1.reshape(1, NO, 1, 1)
    return jax.nn.sigmoid(y).reshape(B, NO, H * W).transpose(0, 2, 1)


if __name__ == "__main__":
    key = jax.random.PRNGKey(0)
    k_img, k_params = jax.random.split(key)

    # PyTorch-convention NCHW input: batch=2, channels=3, spatial=16x16.
    im = jax.random.normal(k_img, (2, CIN, 16, 16), dtype=jnp.float32)

    model = DetectMultiBackendPallas(k_params, fp16=False)
    y = model(im)
    y = jax.block_until_ready(y)

    assert y.shape == (2, 16 * 16, NO), y.shape
    assert bool(jnp.all(jnp.isfinite(y)))
    assert bool(jnp.all((y >= 0.0) & (y <= 1.0)))      # sigmoid output range

    ref = _reference(im, model.w3, model.b3, model.w1, model.b1)
    err = float(jnp.max(jnp.abs(y.astype(jnp.float32) - ref)))
    assert err < 5e-2, f"max abs err vs reference: {err}"
    print("KERNEL_OK")
</pallas_src>

<mosaic_0001>
module attributes {stable_mosaic.version = 11 : i64} {
  func.func @detect_kernel(%arg0: i32, %arg1: i32, %arg2: memref<1x3x2432xbf16, #tpu.memory_space<vmem>>, %arg3: memref<9x8x3xbf16, #tpu.memory_space<vmem>>, %arg4: memref<8x1xf32, #tpu.memory_space<vmem>>, %arg5: memref<8x8xbf16, #tpu.memory_space<vmem>>, %arg6: memref<8x1xf32, #tpu.memory_space<vmem>>, %arg7: memref<1x8x1024xbf16, #tpu.memory_space<vmem>>) attributes {dimension_semantics = [#tpu.dimension_semantics<parallel>, #tpu.dimension_semantics<parallel>], iteration_bounds = array<i64: 2, 2>, scalar_prefetch = 0 : i64, scratch_operands = 0 : i64, tpu.core_type = #tpu.core_type<tc>, window_params = [{transform_indices = @transform_0, window_bounds = array<i64: 1, 3, 2432>}, {pipeline_mode = #tpu.pipeline_mode<synchronous>, transform_indices = @transform_1, window_bounds = array<i64: 9, 8, 3>}, {pipeline_mode = #tpu.pipeline_mode<synchronous>, transform_indices = @transform_2, window_bounds = array<i64: 8, 1>}, {pipeline_mode = #tpu.pipeline_mode<synchronous>, transform_indices = @transform_3, window_bounds = array<i64: 8, 8>}, {pipeline_mode = #tpu.pipeline_mode<synchronous>, transform_indices = @transform_4, window_bounds = array<i64: 8, 1>}, {transform_indices = @transform_5, window_bounds = array<i64: 1, 8, 1024>}]} {
    %c0 = arith.constant 0 : index
    %c0_0 = arith.constant 0 : index
    %0 = vector.load %arg4[%c0, %c0_0] : memref<8x1xf32, #tpu.memory_space<vmem>>, vector<8x1xf32>
    %1 = vector.shape_cast %0 : vector<8x1xf32> to vector<8x1xf32>
    %2 = vector.broadcast %1 : vector<8x1xf32> to vector<8x512xf32>
    %c0_1 = arith.constant 0 : index
    %c0_2 = arith.constant 0 : index
    %3 = vector.load %arg6[%c0_1, %c0_2] : memref<8x1xf32, #tpu.memory_space<vmem>>, vector<8x1xf32>
    %4 = vector.shape_cast %3 : vector<8x1xf32> to vector<8x1xf32>
    %5 = vector.broadcast %4 : vector<8x1xf32> to vector<8x512xf32>
    %c0_3 = arith.constant 0 : index
    %c0_4 = arith.constant 0 : index
    %6 = vector.load %arg5[%c0_3, %c0_4] : memref<8x8xbf16, #tpu.memory_space<vmem>>, vector<8x8xbf16>
    %c1024_i32 = arith.constant 1024 : i32
    %7 = arith.muli %arg1, %c1024_i32 : i32
    %c0_i32 = arith.constant 0 : i32
    %8 = arith.addi %7, %c0_i32 : i32
    %9 = tpu.assume_multiple %8, 128 : i32
    %c0_5 = arith.constant 0 : index
    %c0_6 = arith.constant 0 : index
    %10 = arith.index_cast %9 : i32 to index
    %11 = vector.load %arg2[%c0_5, %c0_6, %10] : memref<1x3x2432xbf16, #tpu.memory_space<vmem>>, vector<1x3x896xbf16>
    %12 = vector.shape_cast %11 : vector<1x3x896xbf16> to vector<3x896xbf16>
    %cst = arith.constant 0.000000e+00 : f32
    %13 = vector.broadcast %cst : f32 to vector<8x512xf32>
    %14 = vector.extract_strided_slice %12 {offsets = [0, 0], sizes = [3, 768], strides = [1, 1]} : vector<3x896xbf16> to vector<3x768xbf16>
    %15 = vector.extract_strided_slice %14 {offsets = [0, 0], sizes = [3, 512], strides = [1, 1]} : vector<3x768xbf16> to vector<3x512xbf16>
    %c0_7 = arith.constant 0 : index
    %c0_8 = arith.constant 0 : index
    %c0_9 = arith.constant 0 : index
    %16 = vector.load %arg3[%c0_7, %c0_8, %c0_9] : memref<9x8x3xbf16, #tpu.memory_space<vmem>>, vector<1x8x3xbf16>
    %17 = vector.shape_cast %16 : vector<1x8x3xbf16> to vector<8x3xbf16>
    %cst_10 = arith.constant dense<0.000000e+00> : vector<8x512xf32>
    %18 = tpu.matmul %17, %15, %cst_10 {dimension_numbers = #tpu.dot_dimension_numbers<[1], [0], [0], [1], [0, 0, 1, 1], [], []>} : vector<8x3xbf16>, vector<3x512xbf16>, vector<8x512xf32> -> vector<8x512xf32>
    %19 = arith.addf %13, %18 : vector<8x512xf32>
    %20 = vector.extract_strided_slice %14 {offsets = [0, 128], sizes = [3, 512], strides = [1, 1]} : vector<3x768xbf16> to vector<3x512xbf16>
    %c3 = arith.constant 3 : index
    %c0_11 = arith.constant 0 : index
    %c0_12 = arith.constant 0 : index
    %21 = vector.load %arg3[%c3, %c0_11, %c0_12] : memref<9x8x3xbf16, #tpu.memory_space<vmem>>, vector<1x8x3xbf16>
    %22 = vector.shape_cast %21 : vector<1x8x3xbf16> to vector<8x3xbf16>
    %cst_13 = arith.constant dense<0.000000e+00> : vector<8x512xf32>
    %23 = tpu.matmul %22, %20, %cst_13 {dimension_numbers = #tpu.dot_dimension_numbers<[1], [0], [0], [1], [0, 0, 1, 1], [], []>} : vector<8x3xbf16>, vector<3x512xbf16>, vector<8x512xf32> -> vector<8x512xf32>
    %24 = arith.addf %19, %23 : vector<8x512xf32>
    %25 = vector.extract_strided_slice %14 {offsets = [0, 256], sizes = [3, 512], strides = [1, 1]} : vector<3x768xbf16> to vector<3x512xbf16>
    %c6 = arith.constant 6 : index
    %c0_14 = arith.constant 0 : index
    %c0_15 = arith.constant 0 : index
    %26 = vector.load %arg3[%c6, %c0_14, %c0_15] : memref<9x8x3xbf16, #tpu.memory_space<vmem>>, vector<1x8x3xbf16>
    %27 = vector.shape_cast %26 : vector<1x8x3xbf16> to vector<8x3xbf16>
    %cst_16 = arith.constant dense<0.000000e+00> : vector<8x512xf32>
    %28 = tpu.matmul %27, %25, %cst_16 {dimension_numbers = #tpu.dot_dimension_numbers<[1], [0], [0], [1], [0, 0, 1, 1], [], []>} : vector<8x3xbf16>, vector<3x512xbf16>, vector<8x512xf32> -> vector<8x512xf32>
    %29 = arith.addf %24, %28 : vector<8x512xf32>
    %30 = vector.extract_strided_slice %12 {offsets = [0, 1], sizes = [3, 768], strides = [1, 1]} : vector<3x896xbf16> to vector<3x768xbf16>
    %31 = vector.extract_strided_slice %30 {offsets = [0, 0], sizes = [3, 512], strides = [1, 1]} : vector<3x768xbf16> to vector<3x512xbf16>
    %c1 = arith.constant 1 : index
    %c0_17 = arith.constant 0 : index
    %c0_18 = arith.constant 0 : index
    %32 = vector.load %arg3[%c1, %c0_17, %c0_18] : memref<9x8x3xbf16, #tpu.memory_space<vmem>>, vector<1x8x3xbf16>
    %33 = vector.shape_cast %32 : vector<1x8x3xbf16> to vector<8x3xbf16>
    %cst_19 = arith.constant dense<0.000000e+00> : vector<8x512xf32>
    %34 = tpu.matmul %33, %31, %cst_19 {dimension_numbers = #tpu.dot_dimension_numbers<[1], [0], [0], [1], [0, 0, 1, 1], [], []>} : vector<8x3xbf16>, vector<3x512xbf16>, vector<8x512xf32> -> vector<8x512xf32>
    %35 = arith.addf %29, %34 : vector<8x512xf32>
    %36 = vector.extract_strided_slice %30 {offsets = [0, 128], sizes = [3, 512], strides = [1, 1]} : vector<3x768xbf16> to vector<3x512xbf16>
    %c4 = arith.constant 4 : index
    %c0_20 = arith.constant 0 : index
    %c0_21 = arith.constant 0 : index
    %37 = vector.load %arg3[%c4, %c0_20, %c0_21] : memref<9x8x3xbf16, #tpu.memory_space<vmem>>, vector<1x8x3xbf16>
    %38 = vector.shape_cast %37 : vector<1x8x3xbf16> to vector<8x3xbf16>
    %cst_22 = arith.constant dense<0.000000e+00> : vector<8x512xf32>
    %39 = tpu.matmul %38, %36, %cst_22 {dimension_numbers = #tpu.dot_dimension_numbers<[1], [0], [0], [1], [0, 0, 1, 1], [], []>} : vector<8x3xbf16>, vector<3x512xbf16>, vector<8x512xf32> -> vector<8x512xf32>
    %40 = arith.addf %35, %39 : vector<8x512xf32>
    %41 = vector.extract_strided_slice %30 {offsets = [0, 256], sizes = [3, 512], strides = [1, 1]} : vector<3x768xbf16> to vector<3x512xbf16>
    %c7 = arith.constant 7 : index
    %c0_23 = arith.constant 0 : index
    %c0_24 = arith.constant 0 : index
    %42 = vector.load %arg3[%c7, %c0_23, %c0_24] : memref<9x8x3xbf16, #tpu.memory_space<vmem>>, vector<1x8x3xbf16>
    %43 = vector.shape_cast %42 : vector<1x8x3xbf16> to vector<8x3xbf16>
    %cst_25 = arith.constant dense<0.000000e+00> : vector<8x512xf32>
    %44 = tpu.matmul %43, %41, %cst_25 {dimension_numbers = #tpu.dot_dimension_numbers<[1], [0], [0], [1], [0, 0, 1, 1], [], []>} : vector<8x3xbf16>, vector<3x512xbf16>, vector<8x512xf32> -> vector<8x512xf32>
    %45 = arith.addf %40, %44 : vector<8x512xf32>
    %46 = vector.extract_strided_slice %12 {offsets = [0, 2], sizes = [3, 768], strides = [1, 1]} : vector<3x896xbf16> to vector<3x768xbf16>
    %47 = vector.extract_strided_slice %46 {offsets = [0, 0], sizes = [3, 512], strides = [1, 1]} : vector<3x768xbf16> to vector<3x512xbf16>
    %c2 = arith.constant 2 : index
    %c0_26 = arith.constant 0 : index
    %c0_27 = arith.constant 0 : index
    %48 = vector.load %arg3[%c2, %c0_26, %c0_27] : memref<9x8x3xbf16, #tpu.memory_space<vmem>>, vector<1x8x3xbf16>
    %49 = vector.shape_cast %48 : vector<1x8x3xbf16> to vector<8x3xbf16>
    %cst_28 = arith.constant dense<0.000000e+00> : vector<8x512xf32>
    %50 = tpu.matmul %49, %47, %cst_28 {dimension_numbers = #tpu.dot_dimension_numbers<[1], [0], [0], [1], [0, 0, 1, 1], [], []>} : vector<8x3xbf16>, vector<3x512xbf16>, vector<8x512xf32> -> vector<8x512xf32>
    %51 = arith.addf %45, %50 : vector<8x512xf32>
    %52 = vector.extract_strided_slice %46 {offsets = [0, 128], sizes = [3, 512], strides = [1, 1]} : vector<3x768xbf16> to vector<3x512xbf16>
    %c5 = arith.constant 5 : index
    %c0_29 = arith.constant 0 : index
    %c0_30 = arith.constant 0 : index
    %53 = vector.load %arg3[%c5, %c0_29, %c0_30] : memref<9x8x3xbf16, #tpu.memory_space<vmem>>, vector<1x8x3xbf16>
    %54 = vector.shape_cast %53 : vector<1x8x3xbf16> to vector<8x3xbf16>
    %cst_31 = arith.constant dense<0.000000e+00> : vector<8x512xf32>
    %55 = tpu.matmul %54, %52, %cst_31 {dimension_numbers = #tpu.dot_dimension_numbers<[1], [0], [0], [1], [0, 0, 1, 1], [], []>} : vector<8x3xbf16>, vector<3x512xbf16>, vector<8x512xf32> -> vector<8x512xf32>
    %56 = arith.addf %51, %55 : vector<8x512xf32>
    %57 = vector.extract_strided_slice %46 {offsets = [0, 256], sizes = [3, 512], strides = [1, 1]} : vector<3x768xbf16> to vector<3x512xbf16>
    %c8 = arith.constant 8 : index
    %c0_32 = arith.constant 0 : index
    %c0_33 = arith.constant 0 : index
    %58 = vector.load %arg3[%c8, %c0_32, %c0_33] : memref<9x8x3xbf16, #tpu.memory_space<vmem>>, vector<1x8x3xbf16>
    %59 = vector.shape_cast %58 : vector<1x8x3xbf16> to vector<8x3xbf16>
    %cst_34 = arith.constant dense<0.000000e+00> : vector<8x512xf32>
    %60 = tpu.matmul %59, %57, %cst_34 {dimension_numbers = #tpu.dot_dimension_numbers<[1], [0], [0], [1], [0, 0, 1, 1], [], []>} : vector<8x3xbf16>, vector<3x512xbf16>, vector<8x512xf32> -> vector<8x512xf32>
    %61 = arith.addf %56, %60 : vector<8x512xf32>
    %62 = arith.addf %61, %2 : vector<8x512xf32>
    %cst_35 = arith.constant 0.000000e+00 : f32
    %63 = vector.broadcast %cst_35 : f32 to vector<8x512xf32>
    %64 = arith.maximumf %62, %63 : vector<8x512xf32>
    %65 = arith.truncf %64 : vector<8x512xf32> to vector<8x512xbf16>
    %cst_36 = arith.constant dense<0.000000e+00> : vector<8x512xf32>
    %66 = tpu.matmul %6, %65, %cst_36 {dimension_numbers = #tpu.dot_dimension_numbers<[1], [0], [0], [1], [0, 0, 1, 1], [], []>} : vector<8x8xbf16>, vector<8x512xbf16>, vector<8x512xf32> -> vector<8x512xf32>
    %67 = arith.addf %66, %5 : vector<8x512xf32>
    %cst_37 = arith.constant 0.000000e+00 : f32
    %68 = vector.broadcast %cst_37 : f32 to vector<8x512xf32>
    %69 = arith.subf %68, %67 : vector<8x512xf32>
    %70 = math.exp %69 : vector<8x512xf32>
    %cst_38 = arith.constant 1.000000e+00 : f32
    %71 = vector.broadcast %cst_38 : f32 to vector<8x512xf32>
    %72 = arith.addf %71, %70 : vector<8x512xf32>
    %73 = tpu.reciprocal %72 {approx = true} : vector<8x512xf32> -> vector<8x512xf32>
    %cst_39 = arith.constant 1.000000e+00 : f32
    %74 = vector.broadcast %cst_39 : f32 to vector<8x512xf32>
    %75 = arith.minimumf %73, %74 : vector<8x512xf32>
    %76 = arith.truncf %75 : vector<8x512xf32> to vector<8x512xbf16>
    %c0_40 = arith.constant 0 : index
    %c0_41 = arith.constant 0 : index
    %c0_42 = arith.constant 0 : index
    %77 = vector.load %arg7[%c0_40, %c0_41, %c0_42] : memref<1x8x1024xbf16, #tpu.memory_space<vmem>>, vector<1x8x512xbf16>
    %78 = vector.shape_cast %77 : vector<1x8x512xbf16> to vector<8x512xbf16>
    %79 = vector.shape_cast %76 : vector<8x512xbf16> to vector<1x8x512xbf16>
    tpu.vector_store %arg7[%c0_40, %c0_41, %c0_42], %79 {strides = array<i32>} : memref<1x8x1024xbf16, #tpu.memory_space<vmem>>, vector<1x8x512xbf16>,
    %c1024_i32_43 = arith.constant 1024 : i32
    %80 = arith.muli %arg1, %c1024_i32_43 : i32
    %c512_i32 = arith.constant 512 : i32
    %81 = arith.addi %80, %c512_i32 : i32
    %82 = tpu.assume_multiple %81, 128 : i32
    %c0_44 = arith.constant 0 : index
    %c0_45 = arith.constant 0 : index
    %83 = arith.index_cast %82 : i32 to index
    %84 = vector.load %arg2[%c0_44, %c0_45, %83] : memref<1x3x2432xbf16, #tpu.memory_space<vmem>>, vector<1x3x896xbf16>
    %85 = vector.shape_cast %84 : vector<1x3x896xbf16> to vector<3x896xbf16>
    %cst_46 = arith.constant 0.000000e+00 : f32
    %86 = vector.broadcast %cst_46 : f32 to vector<8x512xf32>
    %87 = vector.extract_strided_slice %85 {offsets = [0, 0], sizes = [3, 768], strides = [1, 1]} : vector<3x896xbf16> to vector<3x768xbf16>
    %88 = vector.extract_strided_slice %87 {offsets = [0, 0], sizes = [3, 512], strides = [1, 1]} : vector<3x768xbf16> to vector<3x512xbf16>
    %c0_47 = arith.constant 0 : index
    %c0_48 = arith.constant 0 : index
    %c0_49 = arith.constant 0 : index
    %89 = vector.load %arg3[%c0_47, %c0_48, %c0_49] : memref<9x8x3xbf16, #tpu.memory_space<vmem>>, vector<1x8x3xbf16>
    %90 = vector.shape_cast %89 : vector<1x8x3xbf16> to vector<8x3xbf16>
    %cst_50 = arith.constant dense<0.000000e+00> : vector<8x512xf32>
    %91 = tpu.matmul %90, %88, %cst_50 {dimension_numbers = #tpu.dot_dimension_numbers<[1], [0], [0], [1], [0, 0, 1, 1], [], []>} : vector<8x3xbf16>, vector<3x512xbf16>, vector<8x512xf32> -> vector<8x512xf32>
    %92 = arith.addf %86, %91 : vector<8x512xf32>
    %93 = vector.extract_strided_slice %87 {offsets = [0, 128], sizes = [3, 512], strides = [1, 1]} : vector<3x768xbf16> to vector<3x512xbf16>
    %c3_51 = arith.constant 3 : index
    %c0_52 = arith.constant 0 : index
    %c0_53 = arith.constant 0 : index
    %94 = vector.load %arg3[%c3_51, %c0_52, %c0_53] : memref<9x8x3xbf16, #tpu.memory_space<vmem>>, vector<1x8x3xbf16>
    %95 = vector.shape_cast %94 : vector<1x8x3xbf16> to vector<8x3xbf16>
    %cst_54 = arith.constant dense<0.000000e+00> : vector<8x512xf32>
    %96 = tpu.matmul %95, %93, %cst_54 {dimension_numbers = #tpu.dot_dimension_numbers<[1], [0], [0], [1], [0, 0, 1, 1], [], []>} : vector<8x3xbf16>, vector<3x512xbf16>, vector<8x512xf32> -> vector<8x512xf32>
    %97 = arith.addf %92, %96 : vector<8x512xf32>
    %98 = vector.extract_strided_slice %87 {offsets = [0, 256], sizes = [3, 512], strides = [1, 1]} : vector<3x768xbf16> to vector<3x512xbf16>
    %c6_55 = arith.constant 6 : index
    %c0_56 = arith.constant 0 : index
    %c0_57 = arith.constant 0 : index
    %99 = vector.load %arg3[%c6_55, %c0_56, %c0_57] : memref<9x8x3xbf16, #tpu.memory_space<vmem>>, vector<1x8x3xbf16>
    %100 = vector.shape_cast %99 : vector<1x8x3xbf16> to vector<8x3xbf16>
    %cst_58 = arith.constant dense<0.000000e+00> : vector<8x512xf32>
    %101 = tpu.matmul %100, %98, %cst_58 {dimension_numbers = #tpu.dot_dimension_numbers<[1], [0], [0], [1], [0, 0, 1, 1], [], []>} : vector<8x3xbf16>, vector<3x512xbf16>, vector<8x512xf32> -> vector<8x512xf32>
    %102 = arith.addf %97, %101 : vector<8x512xf32>
    %103 = vector.extract_strided_slice %85 {offsets = [0, 1], sizes = [3, 768], strides = [1, 1]} : vector<3x896xbf16> to vector<3x768xbf16>
    %104 = vector.extract_strided_slice %103 {offsets = [0, 0], sizes = [3, 512], strides = [1, 1]} : vector<3x768xbf16> to vector<3x512xbf16>
    %c1_59 = arith.constant 1 : index
    %c0_60 = arith.constant 0 : index
    %c0_61 = arith.constant 0 : index
    %105 = vector.load %arg3[%c1_59, %c0_60, %c0_61] : memref<9x8x3xbf16, #tpu.memory_space<vmem>>, vector<1x8x3xbf16>
    %106 = vector.shape_cast %105 : vector<1x8x3xbf16> to vector<8x3xbf16>
    %cst_62 = arith.constant dense<0.000000e+00> : vector<8x512xf32>
    %107 = tpu.matmul %106, %104, %cst_62 {dimension_numbers = #tpu.dot_dimension_numbers<[1], [0], [0], [1], [0, 0, 1, 1], [], []>} : vector<8x3xbf16>, vector<3x512xbf16>, vector<8x512xf32> -> vector<8x512xf32>
    %108 = arith.addf %102, %107 : vector<8x512xf32>
    %109 = vector.extract_strided_slice %103 {offsets = [0, 128], sizes = [3, 512], strides = [1, 1]} : vector<3x768xbf16> to vector<3x512xbf16>
    %c4_63 = arith.constant 4 : index
    %c0_64 = arith.constant 0 : index
    %c0_65 = arith.constant 0 : index
    %110 = vector.load %arg3[%c4_63, %c0_64, %c0_65] : memref<9x8x3xbf16, #tpu.memory_space<vmem>>, vector<1x8x3xbf16>
    %111 = vector.shape_cast %110 : vector<1x8x3xbf16> to vector<8x3xbf16>
    %cst_66 = arith.constant dense<0.000000e+00> : vector<8x512xf32>
    %112 = tpu.matmul %111, %109, %cst_66 {dimension_numbers = #tpu.dot_dimension_numbers<[1], [0], [0], [1], [0, 0, 1, 1], [], []>} : vector<8x3xbf16>, vector<3x512xbf16>, vector<8x512xf32> -> vector<8x512xf32>
    %113 = arith.addf %108, %112 : vector<8x512xf32>
    %114 = vector.extract_strided_slice %103 {offsets = [0, 256], sizes = [3, 512], strides = [1, 1]} : vector<3x768xbf16> to vector<3x512xbf16>
    %c7_67 = arith.constant 7 : index
    %c0_68 = arith.constant 0 : index
    %c0_69 = arith.constant 0 : index
    %115 = vector.load %arg3[%c7_67, %c0_68, %c0_69] : memref<9x8x3xbf16, #tpu.memory_space<vmem>>, vector<1x8x3xbf16>
    %116 = vector.shape_cast %115 : vector<1x8x3xbf16> to vector<8x3xbf16>
    %cst_70 = arith.constant dense<0.000000e+00> : vector<8x512xf32>
    %117 = tpu.matmul %116, %114, %cst_70 {dimension_numbers = #tpu.dot_dimension_numbers<[1], [0], [0], [1], [0, 0, 1, 1], [], []>} : vector<8x3xbf16>, vector<3x512xbf16>, vector<8x512xf32> -> vector<8x512xf32>
    %118 = arith.addf %113, %117 : vector<8x512xf32>
    %119 = vector.extract_strided_slice %85 {offsets = [0, 2], sizes = [3, 768], strides = [1, 1]} : vector<3x896xbf16> to vector<3x768xbf16>
    %120 = vector.extract_strided_slice %119 {offsets = [0, 0], sizes = [3, 512], strides = [1, 1]} : vector<3x768xbf16> to vector<3x512xbf16>
    %c2_71 = arith.constant 2 : index
    %c0_72 = arith.constant 0 : index
    %c0_73 = arith.constant 0 : index
    %121 = vector.load %arg3[%c2_71, %c0_72, %c0_73] : memref<9x8x3xbf16, #tpu.memory_space<vmem>>, vector<1x8x3xbf16>
    %122 = vector.shape_cast %121 : vector<1x8x3xbf16> to vector<8x3xbf16>
    %cst_74 = arith.constant dense<0.000000e+00> : vector<8x512xf32>
    %123 = tpu.matmul %122, %120, %cst_74 {dimension_numbers = #tpu.dot_dimension_numbers<[1], [0], [0], [1], [0, 0, 1, 1], [], []>} : vector<8x3xbf16>, vector<3x512xbf16>, vector<8x512xf32> -> vector<8x512xf32>
    %124 = arith.addf %118, %123 : vector<8x512xf32>
    %125 = vector.extract_strided_slice %119 {offsets = [0, 128], sizes = [3, 512], strides = [1, 1]} : vector<3x768xbf16> to vector<3x512xbf16>
    %c5_75 = arith.constant 5 : index
    %c0_76 = arith.constant 0 : index
    %c0_77 = arith.constant 0 : index
    %126 = vector.load %arg3[%c5_75, %c0_76, %c0_77] : memref<9x8x3xbf16, #tpu.memory_space<vmem>>, vector<1x8x3xbf16>
    %127 = vector.shape_cast %126 : vector<1x8x3xbf16> to vector<8x3xbf16>
    %cst_78 = arith.constant dense<0.000000e+00> : vector<8x512xf32>
    %128 = tpu.matmul %127, %125, %cst_78 {dimension_numbers = #tpu.dot_dimension_numbers<[1], [0], [0], [1], [0, 0, 1, 1], [], []>} : vector<8x3xbf16>, vector<3x512xbf16>, vector<8x512xf32> -> vector<8x512xf32>
    %129 = arith.addf %124, %128 : vector<8x512xf32>
    %130 = vector.extract_strided_slice %119 {offsets = [0, 256], sizes = [3, 512], strides = [1, 1]} : vector<3x768xbf16> to vector<3x512xbf16>
    %c8_79 = arith.constant 8 : index
    %c0_80 = arith.constant 0 : index
    %c0_81 = arith.constant 0 : index
    %131 = vector.load %arg3[%c8_79, %c0_80, %c0_81] : memref<9x8x3xbf16, #tpu.memory_space<vmem>>, vector<1x8x3xbf16>
    %132 = vector.shape_cast %131 : vector<1x8x3xbf16> to vector<8x3xbf16>
    %cst_82 = arith.constant dense<0.000000e+00> : vector<8x512xf32>
    %133 = tpu.matmul %132, %130, %cst_82 {dimension_numbers = #tpu.dot_dimension_numbers<[1], [0], [0], [1], [0, 0, 1, 1], [], []>} : vector<8x3xbf16>, vector<3x512xbf16>, vector<8x512xf32> -> vector<8x512xf32>
    %134 = arith.addf %129, %133 : vector<8x512xf32>
    %135 = arith.addf %134, %2 : vector<8x512xf32>
    %cst_83 = arith.constant 0.000000e+00 : f32
    %136 = vector.broadcast %cst_83 : f32 to vector<8x512xf32>
    %137 = arith.maximumf %135, %136 : vector<8x512xf32>
    %138 = arith.truncf %137 : vector<8x512xf32> to vector<8x512xbf16>
    %cst_84 = arith.constant dense<0.000000e+00> : vector<8x512xf32>
    %139 = tpu.matmul %6, %138, %cst_84 {dimension_numbers = #tpu.dot_dimension_numbers<[1], [0], [0], [1], [0, 0, 1, 1], [], []>} : vector<8x8xbf16>, vector<8x512xbf16>, vector<8x512xf32> -> vector<8x512xf32>
    %140 = arith.addf %139, %5 : vector<8x512xf32>
    %cst_85 = arith.constant 0.000000e+00 : f32
    %141 = vector.broadcast %cst_85 : f32 to vector<8x512xf32>
    %142 = arith.subf %141, %140 : vector<8x512xf32>
    %143 = math.exp %142 : vector<8x512xf32>
    %cst_86 = arith.constant 1.000000e+00 : f32
    %144 = vector.broadcast %cst_86 : f32 to vector<8x512xf32>
    %145 = arith.addf %144, %143 : vector<8x512xf32>
    %146 = tpu.reciprocal %145 {approx = true} : vector<8x512xf32> -> vector<8x512xf32>
    %cst_87 = arith.constant 1.000000e+00 : f32
    %147 = vector.broadcast %cst_87 : f32 to vector<8x512xf32>
    %148 = arith.minimumf %146, %147 : vector<8x512xf32>
    %149 = arith.truncf %148 : vector<8x512xf32> to vector<8x512xbf16>
    %c0_88 = arith.constant 0 : index
    %c0_89 = arith.constant 0 : index
    %c512 = arith.constant 512 : index
    %150 = vector.load %arg7[%c0_88, %c0_89, %c512] : memref<1x8x1024xbf16, #tpu.memory_space<vmem>>, vector<1x8x512xbf16>
    %151 = vector.shape_cast %150 : vector<1x8x512xbf16> to vector<8x512xbf16>
    %152 = vector.shape_cast %149 : vector<8x512xbf16> to vector<1x8x512xbf16>
    tpu.vector_store %arg7[%c0_88, %c0_89, %c512], %152 {strides = array<i32>} : memref<1x8x1024xbf16, #tpu.memory_space<vmem>>, vector<1x8x512xbf16>,
    return
  }
  func.func @transform_0(%arg0: i32, %arg1: i32) -> (i32, i32, i32) {
    %c0_i32 = arith.constant 0 : i32
    %c0_i32_0 = arith.constant 0 : i32
    %c0_i32_1 = arith.constant 0 : i32
    return %arg0, %c0_i32, %c0_i32_0 : i32, i32, i32
  }
  func.func @transform_1(%arg0: i32, %arg1: i32) -> (i32, i32, i32) {
    %c0_i32 = arith.constant 0 : i32
    %c0_i32_0 = arith.constant 0 : i32
    %c0_i32_1 = arith.constant 0 : i32
    %c0_i32_2 = arith.constant 0 : i32
    return %c0_i32, %c0_i32_0, %c0_i32_1 : i32, i32, i32
  }
  func.func @transform_2(%arg0: i32, %arg1: i32) -> (i32, i32) {
    %c0_i32 = arith.constant 0 : i32
    %c0_i32_0 = arith.constant 0 : i32
    %c0_i32_1 = arith.constant 0 : i32
    return %c0_i32, %c0_i32_0 : i32, i32
  }
  func.func @transform_3(%arg0: i32, %arg1: i32) -> (i32, i32) {
    %c0_i32 = arith.constant 0 : i32
    %c0_i32_0 = arith.constant 0 : i32
    %c0_i32_1 = arith.constant 0 : i32
    return %c0_i32, %c0_i32_0 : i32, i32
  }
  func.func @transform_4(%arg0: i32, %arg1: i32) -> (i32, i32) {
    %c0_i32 = arith.constant 0 : i32
    %c0_i32_0 = arith.constant 0 : i32
    %c0_i32_1 = arith.constant 0 : i32
    return %c0_i32, %c0_i32_0 : i32, i32
  }
  func.func @transform_5(%arg0: i32, %arg1: i32) -> (i32, i32, i32) {
    %c0_i32 = arith.constant 0 : i32
    %c0_i32_0 = arith.constant 0 : i32
    return %arg0, %c0_i32, %arg1 : i32, i32, i32
  }
}

</mosaic_0001>

<llo_original>
// kernel: tpu_custom_call.1
$region0: #{tpu_custom_call.1}
  #allocation0 [shape = 'u32[]', space=smem, size = 0x4, offset = 0x4, fixed_abs, tag = 'smem constant byte address 0x4 - core index']
  #allocation1 [shape = 'u32[72,128]{1,0:T(1,128)}', space=vmem, size = 0x9000, scoped, tag = 'internal scratch']
  %s0 = inlined_call_operand.vmem [shape: bf16[2,3,2432], index: 0, kind: input, shape index: {}]
  %s1 = inlined_call_operand.vmem [shape: bf16[9,8,3], index: 1, kind: input, shape index: {}]
  %s2 = inlined_call_operand.vmem [shape: f32[8,1], index: 2, kind: input, shape index: {}]
  %s3 = inlined_call_operand.vmem [shape: bf16[8,8], index: 3, kind: input, shape index: {}]
  %s4 = inlined_call_operand.vmem [shape: f32[8,1], index: 4, kind: input, shape index: {}]
  %s5 = inlined_call_operand.hbm [shape: bf16[2,8,2048], index: 5, kind: output, shape index: {}]
  %s6 = sld [smem:[#allocation0]]
  $region53: #{tpu_custom_call.1} parent=0
    _
  %s8 = ssub.s32 1, %s6
  %s9 = scalar_select 0, %s8, %s6
  $region1: #{tpu_custom_call.1} parent=0
    #allocation2 [shape = 'u8[32768]{0}', space=vmem, size = 0x8000, scoped, tag = 'output window, operand 0']
    #allocation3 [shape = 's32[2]{0}', space=sflag, size = 0x8, scoped, tag = 'scoped memory for tpu_custom_call.1']
    %10 = vsyncpa [#allocation3], 0
    %s11 = scalar_lea.sflag [#allocation3], 1
    %12 = vsyncpa %s11, 0
    loop: start=0, step=1, limit=6
    $region2: #{tpu_custom_call.1} parent=1 // loop_pre_header
      _
    $region3: #{tpu_custom_call.1} parent=1 // loop_header
      %s14 = sphi 0, %s18
      %p15 = scmp.ge.s32.totalorder %s14, 6
      %s21 = sphi 0, %s33
      %s22 = sphi 0, %s29
      %s23 = sphi 0, %s21
      %s24 = sphi 0, %s22
      %s25 = sphi 0, %s23
      %s26 = sphi 0, %s24
      %s36 = sphi 0, %s38
      %s39 = sphi 0, %s36
      %s40 = sphi 0, %s39
      %s56 = sphi 0, %s40
      %s60 = sphi 0, %s60
      %s62 = sphi 0, %s60
      %s63 = sphi 0, %s62
      %s77 = sphi 0, %s63
      %s81 = sphi 0, %s81
      %s83 = sphi 0, %s81
      %s84 = sphi 0, %s83
      %s98 = sphi 0, %s84
      %s102 = sphi 0, %s102
      %s104 = sphi 0, %s102
      %s105 = sphi 0, %s104
      %s119 = sphi 0, %s105
      %s123 = sphi 0, %s123
      %s125 = sphi 0, %s123
      %s126 = sphi 0, %s125
      %s140 = sphi 0, %s126
      %s148 = sphi 0, %s150
      %s151 = sphi 0, %s148
      %s152 = sphi 0, %s151
      %s168 = sphi 0, %s152
    $region4: #{tpu_custom_call.1} parent=1 // loop_header_branch
      %17 = sbr.rel (%p15) target = $region8
    $region5: #{tpu_custom_call.1} parent=1 // loop_body
      %s19 = ssub.s32 %s14, 1
      %s20 = ssub.s32 %s14, 2
      %s27 = sadd.s32 1, %s22
      %p28 = scmp.ge.s32.totalorder %s27, 2
      %s29 = scalar_select %p28, 0, %s27
      %s30 = sadd.s32 1, %s21
      %s31 = scalar_select %p28, %s30, %s21
      %p32 = scmp.ge.s32.totalorder %s31, 2
      %s33 = scalar_select %p32, 0, %s31
      %s34 = ssub.s32 %s21, %s33
      %p35 = scmp.eq.s32.totalorder %s34, 0
      %s37 = sadd.s32 %s36, 1
      %s38 = scalar_select %p35, %s36, %s37
      %p41 = pneg %p35
      %p42 = scmp.eq.s32.totalorder %s14, 3
      %p43 = por %p41, %p42
      %p44 = scmp.ne.s32.totalorder %s36, %s39
      %p45 = scmp.eq.s32.totalorder %s14, 0
      %p46 = por %p44, %p45
      %p47 = scmp.ne.s32.totalorder %s36, %s39
      %p48 = scmp.eq.s32.totalorder %s19, 3
      %p49 = por %p47, %p48
      %p50 = scmp.ne.s32.totalorder %s39, %s40
      %p51 = scmp.eq.s32.totalorder %s19, 0
      %p52 = por %p50, %p51
      %p53 = scmp.ne.s32.totalorder %s39, %s40
      %p54 = scmp.eq.s32.totalorder %s20, 3
      %p55 = por %p53, %p54
      %p57 = scmp.ne.s32.totalorder %s40, %s56
      %p58 = scmp.eq.s32.totalorder %s20, 0
      %p59 = por %p57, %p58
      %s61 = sadd.s32 %s60, 1
      %p64 = scmp.eq.s32.totalorder %s14, 3
      %p65 = scmp.ne.s32.totalorder %s60, %s62
      %p66 = scmp.eq.s32.totalorder %s14, 0
      %p67 = por %p65, %p66
      %p68 = scmp.ne.s32.totalorder %s60, %s62
      %p69 = scmp.eq.s32.totalorder %s19, 3
      %p70 = por %p68, %p69
      %p71 = scmp.ne.s32.totalorder %s62, %s63
      %p72 = scmp.eq.s32.totalorder %s19, 0
      %p73 = por %p71, %p72
      %p74 = scmp.ne.s32.totalorder %s62, %s63
      %p75 = scmp.eq.s32.totalorder %s20, 3
      %p76 = por %p74, %p75
      %p78 = scmp.ne.s32.totalorder %s63, %s77
      %p79 = scmp.eq.s32.totalorder %s20, 0
      %p80 = por %p78, %p79
      %s82 = sadd.s32 %s81, 1
      %p85 = scmp.eq.s32.totalorder %s14, 3
      %p86 = scmp.ne.s32.totalorder %s81, %s83
      %p87 = scmp.eq.s32.totalorder %s14, 0
      %p88 = por %p86, %p87
      %p89 = scmp.ne.s32.totalorder %s81, %s83
      %p90 = scmp.eq.s32.totalorder %s19, 3
      %p91 = por %p89, %p90
      %p92 = scmp.ne.s32.totalorder %s83, %s84
      %p93 = scmp.eq.s32.totalorder %s19, 0
      %p94 = por %p92, %p93
      %p95 = scmp.ne.s32.totalorder %s83, %s84
      %p96 = scmp.eq.s32.totalorder %s20, 3
      %p97 = por %p95, %p96
      %p99 = scmp.ne.s32.totalorder %s84, %s98
      %p100 = scmp.eq.s32.totalorder %s20, 0
      %p101 = por %p99, %p100
      %s103 = sadd.s32 %s102, 1
      %p106 = scmp.eq.s32.totalorder %s14, 3
      %p107 = scmp.ne.s32.totalorder %s102, %s104
      %p108 = scmp.eq.s32.totalorder %s14, 0
      %p109 = por %p107, %p108
      %p110 = scmp.ne.s32.totalorder %s102, %s104
      %p111 = scmp.eq.s32.totalorder %s19, 3
      %p112 = por %p110, %p111
      %p113 = scmp.ne.s32.totalorder %s104, %s105
      %p114 = scmp.eq.s32.totalorder %s19, 0
      %p115 = por %p113, %p114
      %p116 = scmp.ne.s32.totalorder %s104, %s105
      %p117 = scmp.eq.s32.totalorder %s20, 3
      %p118 = por %p116, %p117
      %p120 = scmp.ne.s32.totalorder %s105, %s119
      %p121 = scmp.eq.s32.totalorder %s20, 0
      %p122 = por %p120, %p121
      %s124 = sadd.s32 %s123, 1
      %p127 = scmp.eq.s32.totalorder %s14, 3
      %p128 = scmp.ne.s32.totalorder %s123, %s125
      %p129 = scmp.eq.s32.totalorder %s14, 0
      %p130 = por %p128, %p129
      %p131 = scmp.ne.s32.totalorder %s123, %s125
      %p132 = scmp.eq.s32.totalorder %s19, 3
      %p133 = por %p131, %p132
      %p134 = scmp.ne.s32.totalorder %s125, %s126
      %p135 = scmp.eq.s32.totalorder %s19, 0
      %p136 = por %p134, %p135
      %p137 = scmp.ne.s32.totalorder %s125, %s126
      %p138 = scmp.eq.s32.totalorder %s20, 3
      %p139 = por %p137, %p138
      %p141 = scmp.ne.s32.totalorder %s126, %s140
      %p142 = scmp.eq.s32.totalorder %s20, 0
      %p143 = por %p141, %p142
      %s144 = ssub.s32 %s21, %s33
      %s145 = ssub.s32 %s22, %s29
      %s146 = sor.u32 %s144, %s145
      %p147 = scmp.eq.s32.totalorder %s146, 0
      %s149 = sadd.s32 %s148, 1
      %s150 = scalar_select %p147, %s148, %s149
      %p153 = pneg %p147
      %p154 = scmp.eq.s32.totalorder %s14, 3
      %p155 = por %p153, %p154
      %p156 = scmp.ne.s32.totalorder %s148, %s151
      %p157 = scmp.eq.s32.totalorder %s14, 0
      %p158 = por %p156, %p157
      %p159 = scmp.ne.s32.totalorder %s148, %s151
      %p160 = scmp.eq.s32.totalorder %s19, 3
      %p161 = por %p159, %p160
      %p162 = scmp.ne.s32.totalorder %s151, %s152
      %p163 = scmp.eq.s32.totalorder %s19, 0
      %p164 = por %p162, %p163
      %p165 = scmp.ne.s32.totalorder %s151, %s152
      %p166 = scmp.eq.s32.totalorder %s20, 3
      %p167 = por %p165, %p166
      %p169 = scmp.ne.s32.totalorder %s152, %s168
      %p170 = scmp.eq.s32.totalorder %s20, 0
      %p171 = por %p169, %p170
      %p172 = scmp.le.s32.totalorder 1, %s14
      %p173 = scmp.lt.s32.totalorder %s14, 5
      %p174 = pnand %p172, %p173
      %p175 = pneg %p174
      // Predicated region
      $region9: #{tpu_custom_call.1} parent=5 // pred_check
        _
      $region10: #{tpu_custom_call.1} parent=5 // pred_check_branch
        %177 = sbr.rel (%p174) target = $region12
      $region11: #{tpu_custom_call.1} parent=5 // pred_region
        %s178 = ssub.s32 %s14, 1
        // Predicated region
        $region13: #{tpu_custom_call.1} parent=11 // pred_check
          %p179 = pneg %p73
        $region14: #{tpu_custom_call.1} parent=11 // pred_check_branch
          %181 = sbr.rel (%p179) target = $region16
        $region15: #{tpu_custom_call.1} parent=11 // pred_region
          _
        $region16: #{tpu_custom_call.1} parent=11 // pred_fallthru
          _
        // Predicated region
        $region17: #{tpu_custom_call.1} parent=11 // pred_check
          %p182 = pneg %p94
        $region18: #{tpu_custom_call.1} parent=11 // pred_check_branch
          %184 = sbr.rel (%p182) target = $region20
        $region19: #{tpu_custom_call.1} parent=11 // pred_region
          _
        $region20: #{tpu_custom_call.1} parent=11 // pred_fallthru
          _
        // Predicated region
        $region21: #{tpu_custom_call.1} parent=11 // pred_check
          %p185 = pneg %p115
        $region22: #{tpu_custom_call.1} parent=11 // pred_check_branch
          %187 = sbr.rel (%p185) target = $region24
        $region23: #{tpu_custom_call.1} parent=11 // pred_region
          _
        $region24: #{tpu_custom_call.1} parent=11 // pred_fallthru
          _
        // Predicated region
        $region25: #{tpu_custom_call.1} parent=11 // pred_check
          %p188 = pneg %p136
        $region26: #{tpu_custom_call.1} parent=11 // pred_check_branch
          %190 = sbr.rel (%p188) target = $region28
        $region27: #{tpu_custom_call.1} parent=11 // pred_region
          _
        $region28: #{tpu_custom_call.1} parent=11 // pred_fallthru
          _
      $region12: #{tpu_custom_call.1} parent=5 // pred_fallthru
        _
      %p191 = scmp.lt.s32.totalorder %s14, 4
      // Predicated region
      $region29: #{tpu_custom_call.1} parent=5 // pred_check
        %p192 = pneg %p191
      $region30: #{tpu_custom_call.1} parent=5 // pred_check_branch
        %194 = sbr.rel (%p192) target = $region32
      $region31: #{tpu_custom_call.1} parent=5 // pred_region
        // Predicated region
        $region33: #{tpu_custom_call.1} parent=31 // pred_check
          %p195 = pneg %p46
        $region34: #{tpu_custom_call.1} parent=31 // pred_check_branch
          %197 = sbr.rel (%p195) target = $region36
        $region35: #{tpu_custom_call.1} parent=31 // pred_region
          %p198 = scmp.lt.s32.totalorder %s21, 1
          %s199 = scalar_select %p198, %s21, 1
          %s200 = smul.addr %s199, 19
          %s201 = smul.addr %s200, 2
          %s202 = scalar_lea.vmem %s0, %s201
        $region36: #{tpu_custom_call.1} parent=31 // pred_fallthru
          _
      $region32: #{tpu_custom_call.1} parent=5 // pred_fallthru
        _
      %p203 = scmp.le.s32.totalorder 1, %s14
      %p204 = scmp.lt.s32.totalorder %s14, 5
      %p205 = pnand %p203, %p204
      %p206 = pneg %p205
      // Predicated region
      $region37: #{tpu_custom_call.1} parent=5 // pred_check
        _
      $region38: #{tpu_custom_call.1} parent=5 // pred_check_branch
        %208 = sbr.rel (%p205) target = $region40
      $region39: #{tpu_custom_call.1} parent=5 // pred_region
        %s209 = ssub.s32 %s14, 1
        %p210 = scmp.lt.s32.totalorder %s23, 1
        %s211 = scalar_select %p210, %s23, 1
        %s212 = smul.addr %s211, 19
        %s213 = smul.addr %s212, 2
        %s214 = scalar_lea.vmem %s0, %s213
        %p215 = pneg %p52
        %p216 = pneg %p49
        %p217 = pneg %p73
        %p218 = pneg %p70
        %p219 = pneg %p94
        %p220 = pneg %p91
        %p221 = pneg %p115
        %p222 = pneg %p112
        %p223 = pneg %p136
        %p224 = pneg %p133
        %p225 = pneg %p164
        %p226 = pneg %p161
        %s227 = sand.u32 %s151, 1
        %s228 = scalar_lea.sflag [#allocation3], %s227
        %s229 = sand.u32 %s151, 1
        %s230 = smul.addr %s229, 32
        %s231 = scalar_lea.vmem [#allocation2], %s230
        %p232 = scmp.lt.s32.totalorder %s23, 1
        %s233 = scalar_select %p232, %s23, 1
        %s234 = smul.addr %s233, 19
        %s235 = smul.addr %s234, 2
        %s236 = scalar_lea.vmem %s0, %s235
        %s237 = smul.u32 8, %s24
        %v239 = vld [vmem:[%s2] sm:$0xff]
        %241 = vset.pattern.permute.xlu0 0
        %242 = vperm.xlu0 %241, %v239
        %v243 = vpop.permute.xlu0 %242
        %v245 = vld [vmem:[%s4] sm:$0xff]
        %247 = vset.pattern.permute.xlu0 0
        %248 = vperm.xlu0 %247, %v245
        %v249 = vpop.permute.xlu0 %248
        %v251 = vld [vmem:[%s3] sm:$0xf]
        %s252 = smul.u32 %s24, 1024
        %s253 = sshra.s32 %s252, 7
        %s254 = sand.u32 %s252, 127
        %s255 = smul.addr %s253, 2
        %s256 = scalar_lea.vmem %s236, %s255
        %v257 = vld [vmem:[%s256] sm:$0xff]
        %v258 = vld [vmem:[%s256 + $0x8] sm:$0x3f]
        %v259 = vld [vmem:[%s1] sm:$0xf]
        %s260 = scalar_lea.vmem %s1, 12
        %v261 = vld [vmem:[%s260] sm:$0xf]
        %263 = vst [vmem:[#allocation1] ss:$4 sm:$0xff] %v257
        %s265 = scalar_lea.vmem [#allocation1], 32
        %266 = vst [vmem:[%s265] ss:$4 sm:$0xff] %v258
        %v267 = vld.sshfl [vmem:[#allocation1 + $0x8] sm:$0xff pattern:$0x73625140]
        %v268 = vld.sshfl [vmem:[#allocation1 + $0x10] sm:$0xff pattern:$0x73625140]
        %v269 = vld.sshfl [vmem:[#allocation1 + $0x18] sm:$0xff pattern:$0x73625140]
        %v270 = vld.sshfl [vmem:[#allocation1 + $0x20] sm:$0xff pattern:$0x73625140]
        %vm271 = vcmask 23552
        %v273 = vsel %vm271, %v261, 0
        %vm275 = vcmask 1040384
        %vm276 = vcmask 1041408
        %v277 = vsel %vm275, 4294967295, 65535
        %v278 = vsel %vm276, %v277, 0
        %v279 = vand.u32 %v267, %v278
        %v281 = vand.u32 %v268, %v278
        %v283 = vand.u32 %v269, %v278
        %v285 = vand.u32 %v270, %v278
        %287 = vmatpush.bf16.msra.mxu0 0
        %288 = vmatpush.bf16.msra.mxu0 0
        %289 = vmatpush.bf16.msra.mxu0 0
        %290 = vmatpush.bf16.msra.mxu0 0
        %291 = vmatpush.bf16.msra.mxu0 0
        %292 = vmatpush.bf16.msra.mxu0 0
        %293 = vmatpush.bf16.msra.mxu0 0
        %294 = vmatpush.bf16.msra.mxu0 %v279
        %295 = vmatmul.bf16.gmra.mxu0 %v273
        %v296 = vpop.f32.mrf.mxu0
        %v297 = vadd.f32 0.0, %v296
        %v298 = vpop.f32.mrf.mxu0
        %299 = vdwg.mxu0
        %300 = vmatpush.bf16.msra.mxu0 0
        %301 = vmatpush.bf16.msra.mxu0 0
        %302 = vmatpush.bf16.msra.mxu0 0
        %303 = vmatpush.bf16.msra.mxu0 0
        %304 = vmatpush.bf16.msra.mxu0 0
        %305 = vmatpush.bf16.msra.mxu0 0
        %306 = vmatpush.bf16.msra.mxu0 0
        %307 = vmatpush.bf16.msra.mxu0 %v281
        %308 = vmatmul.bf16.gmra.mxu0 %v273
        %v309 = vpop.f32.mrf.mxu0
        %v310 = vadd.f32 0.0, %v309
        %v311 = vpop.f32.mrf.mxu0
        %312 = vdwg.mxu0
        %313 = vmatpush.bf16.msra.mxu0 0
        %314 = vmatpush.bf16.msra.mxu0 0
        %315 = vmatpush.bf16.msra.mxu0 0
        %316 = vmatpush.bf16.msra.mxu0 0
        %317 = vmatpush.bf16.msra.mxu0 0
        %318 = vmatpush.bf16.msra.mxu0 0
        %319 = vmatpush.bf16.msra.mxu0 0
        %320 = vmatpush.bf16.msra.mxu0 %v283
        %321 = vmatmul.bf16.gmra.mxu0 %v273
        %v322 = vpop.f32.mrf.mxu0
        %v323 = vadd.f32 0.0, %v322
        %v324 = vpop.f32.mrf.mxu0
        %325 = vdwg.mxu0
        %326 = vmatpush.bf16.msra.mxu0 0
        %327 = vmatpush.bf16.msra.mxu0 0
        %328 = vmatpush.bf16.msra.mxu0 0
        %329 = vmatpush.bf16.msra.mxu0 0
        %330 = vmatpush.bf16.msra.mxu0 0
        %331 = vmatpush.bf16.msra.mxu0 0
        %332 = vmatpush.bf16.msra.mxu0 0
        %333 = vmatpush.bf16.msra.mxu0 %v285
        %334 = vmatmul.bf16.gmra.mxu0 %v273
        %v335 = vpop.f32.mrf.mxu0
        %v336 = vadd.f32 0.0, %v335
        %v337 = vpop.f32.mrf.mxu0
        %338 = vdwg.mxu0
        %339 = vst [vmem:[#allocation1] ss:$4 sm:$0xff] %v257
        %v340 = vld.sshfl [vmem:[#allocation1] sm:$0xff pattern:$0x73625140]
        %v341 = vld.sshfl [vmem:[#allocation1 + $0x8] sm:$0xff pattern:$0x73625140]
        %v342 = vld.sshfl [vmem:[#allocation1 + $0x10] sm:$0xff pattern:$0x73625140]
        %v343 = vld.sshfl [vmem:[#allocation1 + $0x18] sm:$0xff pattern:$0x73625140]
        %v345 = vsel %vm271, %v259, 0
        %v347 = vand.u32 %v340, %v278
        %v349 = vand.u32 %v341, %v278
        %v351 = vand.u32 %v342, %v278
        %v353 = vand.u32 %v343, %v278
        %355 = vmatpush.bf16.msra.mxu0 0
        %356 = vmatpush.bf16.msra.mxu0 0
        %357 = vmatpush.bf16.msra.mxu0 0
        %358 = vmatpush.bf16.msra.mxu0 0
        %359 = vmatpush.bf16.msra.mxu0 0
        %360 = vmatpush.bf16.msra.mxu0 0
        %361 = vmatpush.bf16.msra.mxu0 0
        %362 = vmatpush.bf16.msra.mxu0 %v347
        %363 = vmatmul.bf16.gmra.mxu0 %v345
        %v364 = vpop.f32.mrf.mxu0
        %v365 = vadd.f32 %v297, %v364
        %v366 = vpop.f32.mrf.mxu0
        %367 = vdwg.mxu0
        %368 = vmatpush.bf16.msra.mxu0 0
        %369 = vmatpush.bf16.msra.mxu0 0
        %370 = vmatpush.bf16.msra.mxu0 0
        %371 = vmatpush.bf16.msra.mxu0 0
        %372 = vmatpush.bf16.msra.mxu0 0
        %373 = vmatpush.bf16.msra.mxu0 0
        %374 = vmatpush.bf16.msra.mxu0 0
        %375 = vmatpush.bf16.msra.mxu0 %v349
        %376 = vmatmul.bf16.gmra.mxu0 %v345
        %v377 = vpop.f32.mrf.mxu0
        %v378 = vadd.f32 %v310, %v377
        %v379 = vpop.f32.mrf.mxu0
        %380 = vdwg.mxu0
        %381 = vmatpush.bf16.msra.mxu0 0
        %382 = vmatpush.bf16.msra.mxu0 0
        %383 = vmatpush.bf16.msra.mxu0 0
        %384 = vmatpush.bf16.msra.mxu0 0
        %385 = vmatpush.bf16.msra.mxu0 0
        %386 = vmatpush.bf16.msra.mxu0 0
        %387 = vmatpush.bf16.msra.mxu0 0
        %388 = vmatpush.bf16.msra.mxu0 %v351
        %389 = vmatmul.bf16.gmra.mxu0 %v345
        %v390 = vpop.f32.mrf.mxu0
        %v391 = vadd.f32 %v323, %v390
        %v392 = vpop.f32.mrf.mxu0
        %393 = vdwg.mxu0
        %394 = vmatpush.bf16.msra.mxu0 0
        %395 = vmatpush.bf16.msra.mxu0 0
        %396 = vmatpush.bf16.msra.mxu0 0
        %397 = vmatpush.bf16.msra.mxu0 0
        %398 = vmatpush.bf16.msra.mxu0 0
        %399 = vmatpush.bf16.msra.mxu0 0
        %400 = vmatpush.bf16.msra.mxu0 0
        %401 = vmatpush.bf16.msra.mxu0 %v353
        %402 = vmatmul.bf16.gmra.mxu0 %v345
        %v403 = vpop.f32.mrf.mxu0
        %v404 = vadd.f32 %v336, %v403
        %v405 = vpop.f32.mrf.mxu0
        %406 = vdwg.mxu0
        %s407 = scalar_lea.vmem %s1, 24
        %v408 = vld [vmem:[%s407] sm:$0xf]
        %409 = vst [vmem:[#allocation1] ss:$4 sm:$0xff] %v257
        %s410 = scalar_lea.vmem [#allocation1], 32
        %411 = vst [vmem:[%s410] ss:$4 sm:$0xff] %v258
        %v412 = vld.sshfl [vmem:[#allocation1 + $0x10] sm:$0xff pattern:$0x73625140]
        %v413 = vld.sshfl [vmem:[#allocation1 + $0x18] sm:$0xff pattern:$0x73625140]
        %v414 = vld.sshfl [vmem:[#allocation1 + $0x20] sm:$0xff pattern:$0x73625140]
        %v415 = vld.sshfl [vmem:[#allocation1 + $0x28] sm:$0xff pattern:$0x73625140]
        %v417 = vsel %vm271, %v408, 0
        %v419 = vand.u32 %v412, %v278
        %v421 = vand.u32 %v413, %v278
        %v423 = vand.u32 %v414, %v278
        %v425 = vand.u32 %v415, %v278
        %427 = vmatpush.bf16.msra.mxu0 0
        %428 = vmatpush.bf16.msra.mxu0 0
        %429 = vmatpush.bf16.msra.mxu0 0
        %430 = vmatpush.bf16.msra.mxu0 0
        %431 = vmatpush.bf16.msra.mxu0 0
        %432 = vmatpush.bf16.msra.mxu0 0
        %433 = vmatpush.bf16.msra.mxu0 0
        %434 = vmatpush.bf16.msra.mxu0 %v419
        %435 = vmatmul.bf16.gmra.mxu0 %v417
        %v436 = vpop.f32.mrf.mxu0
        %v437 = vadd.f32 0.0, %v436
        %v438 = vpop.f32.mrf.mxu0
        %439 = vdwg.mxu0
        %440 = vmatpush.bf16.msra.mxu0 0
        %441 = vmatpush.bf16.msra.mxu0 0
        %442 = vmatpush.bf16.msra.mxu0 0
        %443 = vmatpush.bf16.msra.mxu0 0
        %444 = vmatpush.bf16.msra.mxu0 0
        %445 = vmatpush.bf16.msra.mxu0 0
        %446 = vmatpush.bf16.msra.mxu0 0
        %447 = vmatpush.bf16.msra.mxu0 %v421
        %448 = vmatmul.bf16.gmra.mxu0 %v417
        %v449 = vpop.f32.mrf.mxu0
        %v450 = vadd.f32 0.0, %v449
        %v451 = vpop.f32.mrf.mxu0
        %452 = vdwg.mxu0
        %453 = vmatpush.bf16.msra.mxu0 0
        %454 = vmatpush.bf16.msra.mxu0 0
        %455 = vmatpush.bf16.msra.mxu0 0
        %456 = vmatpush.bf16.msra.mxu0 0
        %457 = vmatpush.bf16.msra.mxu0 0
        %458 = vmatpush.bf16.msra.mxu0 0
        %459 = vmatpush.bf16.msra.mxu0 0
        %460 = vmatpush.bf16.msra.mxu0 %v423
        %461 = vmatmul.bf16.gmra.mxu0 %v417
        %v462 = vpop.f32.mrf.mxu0
        %v463 = vadd.f32 0.0, %v462
        %v464 = vpop.f32.mrf.mxu0
        %465 = vdwg.mxu0
        %466 = vmatpush.bf16.msra.mxu0 0
        %467 = vmatpush.bf16.msra.mxu0 0
        %468 = vmatpush.bf16.msra.mxu0 0
        %469 = vmatpush.bf16.msra.mxu0 0
        %470 = vmatpush.bf16.msra.mxu0 0
        %471 = vmatpush.bf16.msra.mxu0 0
        %472 = vmatpush.bf16.msra.mxu0 0
        %473 = vmatpush.bf16.msra.mxu0 %v425
        %474 = vmatmul.bf16.gmra.mxu0 %v417
        %v475 = vpop.f32.mrf.mxu0
        %v476 = vadd.f32 0.0, %v475
        %v477 = vpop.f32.mrf.mxu0
        %478 = vdwg.mxu0
        %v479 = vadd.f32 %v365, %v437
        %v480 = vadd.f32 %v378, %v450
        %v481 = vadd.f32 %v391, %v463
        %v482 = vadd.f32 %v404, %v476
        %s483 = scalar_lea.vmem %s1, 4
        %v484 = vld [vmem:[%s483] sm:$0xf]
        %485 = vst [vmem:[#allocation1] ss:$4 sm:$0xff] %v257
        %s486 = scalar_lea.vmem [#allocation1], 32
        %487 = vst [vmem:[%s486] ss:$4 sm:$0xff] %v258
        %v488 = vld.sshfl [vmem:[#allocation1] sm:$0xff pattern:$0x73625140]
        %v490 = vld.sshfl [vmem:[#allocation1 + $0x8] sm:$0xff pattern:$0x73625140]
        %v492 = vld.sshfl [vmem:[#allocation1 + $0x10] sm:$0xff pattern:$0x73625140]
        %v494 = vld.sshfl [vmem:[#allocation1 + $0x18] sm:$0xff pattern:$0x73625140]
        %v496 = vld.sshfl [vmem:[#allocation1 + $0x20] sm:$0xff pattern:$0x73625140]
        %498 = vrot.lane.b32.xlu0 %v488, 127
        %v499 = vpop.permute.xlu0 %498
        %500 = vrot.lane.b32.xlu0 %v490, 127
        %v501 = vpop.permute.xlu0 %500
        %502 = vrot.lane.b32.xlu0 %v492, 127
        %v503 = vpop.permute.xlu0 %502
        %504 = vrot.lane.b32.xlu0 %v494, 127
        %v505 = vpop.permute.xlu0 %504
        %506 = vrot.lane.b32.xlu0 %v496, 127
        %v507 = vpop.permute.xlu0 %506
        %vm508 = vcmask 1039360
        %v509 = vsel %vm508, %v499, %v501
        %v510 = vsel %vm508, %v501, %v503
        %v511 = vsel %vm508, %v503, %v505
        %v512 = vsel %vm508, %v505, %v507
        %v514 = vsel %vm271, %v484, 0
        %v517 = vand.u32 %v509, %v278
        %v520 = vand.u32 %v510, %v278
        %v523 = vand.u32 %v511, %v278
        %v526 = vand.u32 %v512, %v278
        %528 = vmatpush.bf16.msra.mxu0 0
        %529 = vmatpush.bf16.msra.mxu0 0
        %530 = vmatpush.bf16.msra.mxu0 0
        %531 = vmatpush.bf16.msra.mxu0 0
        %532 = vmatpush.bf16.msra.mxu0 0
        %533 = vmatpush.bf16.msra.mxu0 0
        %534 = vmatpush.bf16.msra.mxu0 0
        %535 = vmatpush.bf16.msra.mxu0 %v517
        %536 = vmatmul.bf16.gmra.mxu0 %v514
        %v537 = vpop.f32.mrf.mxu0
        %v538 = vadd.f32 0.0, %v537
        %v539 = vpop.f32.mrf.mxu0
        %540 = vdwg.mxu0
        %541 = vmatpush.bf16.msra.mxu0 0
        %542 = vmatpush.bf16.msra.mxu0 0
        %543 = vmatpush.bf16.msra.mxu0 0
        %544 = vmatpush.bf16.msra.mxu0 0
        %545 = vmatpush.bf16.msra.mxu0 0
        %546 = vmatpush.bf16.msra.mxu0 0
        %547 = vmatpush.bf16.msra.mxu0 0
        %548 = vmatpush.bf16.msra.mxu0 %v520
        %549 = vmatmul.bf16.gmra.mxu0 %v514
        %v550 = vpop.f32.mrf.mxu0
        %v551 = vadd.f32 0.0, %v550
        %v552 = vpop.f32.mrf.mxu0
        %553 = vdwg.mxu0
        %554 = vmatpush.bf16.msra.mxu0 0
        %555 = vmatpush.bf16.msra.mxu0 0
        %556 = vmatpush.bf16.msra.mxu0 0
        %557 = vmatpush.bf16.msra.mxu0 0
        %558 = vmatpush.bf16.msra.mxu0 0
        %559 = vmatpush.bf16.msra.mxu0 0
        %560 = vmatpush.bf16.msra.mxu0 0
        %561 = vmatpush.bf16.msra.mxu0 %v523
        %562 = vmatmul.bf16.gmra.mxu0 %v514
        %v563 = vpop.f32.mrf.mxu0
        %v564 = vadd.f32 0.0, %v563
        %v565 = vpop.f32.mrf.mxu0
        %566 = vdwg.mxu0
        %567 = vmatpush.bf16.msra.mxu0 0
        %568 = vmatpush.bf16.msra.mxu0 0
        %569 = vmatpush.bf16.msra.mxu0 0
        %570 = vmatpush.bf16.msra.mxu0 0
        %571 = vmatpush.bf16.msra.mxu0 0
        %572 = vmatpush.bf16.msra.mxu0 0
        %573 = vmatpush.bf16.msra.mxu0 0
        %574 = vmatpush.bf16.msra.mxu0 %v526
        %575 = vmatmul.bf16.gmra.mxu0 %v514
        %v576 = vpop.f32.mrf.mxu0
        %v577 = vadd.f32 0.0, %v576
        %v578 = vpop.f32.mrf.mxu0
        %579 = vdwg.mxu0
        %v580 = vadd.f32 %v479, %v538
        %v581 = vadd.f32 %v480, %v551
        %v582 = vadd.f32 %v481, %v564
        %v583 = vadd.f32 %v482, %v577
        %s584 = scalar_lea.vmem %s1, 16
        %v585 = vld [vmem:[%s584] sm:$0xf]
        %586 = vst [vmem:[#allocation1] ss:$4 sm:$0xff] %v257
        %s587 = scalar_lea.vmem [#allocation1], 32
        %588 = vst [vmem:[%s587] ss:$4 sm:$0xff] %v258
        %v589 = vld.sshfl [vmem:[#allocation1 + $0x8] sm:$0xff pattern:$0x73625140]
        %v591 = vld.sshfl [vmem:[#allocation1 + $0x10] sm:$0xff pattern:$0x73625140]
        %v593 = vld.sshfl [vmem:[#allocation1 + $0x18] sm:$0xff pattern:$0x73625140]
        %v595 = vld.sshfl [vmem:[#allocation1 + $0x20] sm:$0xff pattern:$0x73625140]
        %v597 = vld.sshfl [vmem:[#allocation1 + $0x28] sm:$0xff pattern:$0x73625140]
        %599 = vrot.lane.b32.xlu0 %v589, 127
        %v600 = vpop.permute.xlu0 %599
        %601 = vrot.lane.b32.xlu0 %v591, 127
        %v602 = vpop.permute.xlu0 %601
        %603 = vrot.lane.b32.xlu0 %v593, 127
        %v604 = vpop.permute.xlu0 %603
        %605 = vrot.lane.b32.xlu0 %v595, 127
        %v606 = vpop.permute.xlu0 %605
        %607 = vrot.lane.b32.xlu0 %v597, 127
        %v608 = vpop.permute.xlu0 %607
        %v609 = vsel %vm508, %v600, %v602
        %v610 = vsel %vm508, %v602, %v604
        %v611 = vsel %vm508, %v604, %v606
        %v612 = vsel %vm508, %v606, %v608
        %v614 = vsel %vm271, %v585, 0
        %v617 = vand.u32 %v609, %v278
        %v620 = vand.u32 %v610, %v278
        %v623 = vand.u32 %v611, %v278
        %v626 = vand.u32 %v612, %v278
        %628 = vmatpush.bf16.msra.mxu0 0
        %629 = vmatpush.bf16.msra.mxu0 0
        %630 = vmatpush.bf16.msra.mxu0 0
        %631 = vmatpush.bf16.msra.mxu0 0
        %632 = vmatpush.bf16.msra.mxu0 0
        %633 = vmatpush.bf16.msra.mxu0 0
        %634 = vmatpush.bf16.msra.mxu0 0
        %635 = vmatpush.bf16.msra.mxu0 %v617
        %636 = vmatmul.bf16.gmra.mxu0 %v614
        %v637 = vpop.f32.mrf.mxu0
        %v638 = vadd.f32 0.0, %v637
        %v639 = vpop.f32.mrf.mxu0
        %640 = vdwg.mxu0
        %641 = vmatpush.bf16.msra.mxu0 0
        %642 = vmatpush.bf16.msra.mxu0 0
        %643 = vmatpush.bf16.msra.mxu0 0
        %644 = vmatpush.bf16.msra.mxu0 0
        %645 = vmatpush.bf16.msra.mxu0 0
        %646 = vmatpush.bf16.msra.mxu0 0
        %647 = vmatpush.bf16.msra.mxu0 0
        %648 = vmatpush.bf16.msra.mxu0 %v620
        %649 = vmatmul.bf16.gmra.mxu0 %v614
        %v650 = vpop.f32.mrf.mxu0
        %v651 = vadd.f32 0.0, %v650
        %v652 = vpop.f32.mrf.mxu0
        %653 = vdwg.mxu0
        %654 = vmatpush.bf16.msra.mxu0 0
        %655 = vmatpush.bf16.msra.mxu0 0
        %656 = vmatpush.bf16.msra.mxu0 0
        %657 = vmatpush.bf16.msra.mxu0 0
        %658 = vmatpush.bf16.msra.mxu0 0
        %659 = vmatpush.bf16.msra.mxu0 0
        %660 = vmatpush.bf16.msra.mxu0 0
        %661 = vmatpush.bf16.msra.mxu0 %v623
        %662 = vmatmul.bf16.gmra.mxu0 %v614
        %v663 = vpop.f32.mrf.mxu0
        %v664 = vadd.f32 0.0, %v663
        %v665 = vpop.f32.mrf.mxu0
        %666 = vdwg.mxu0
        %667 = vmatpush.bf16.msra.mxu0 0
        %668 = vmatpush.bf16.msra.mxu0 0
        %669 = vmatpush.bf16.msra.mxu0 0
        %670 = vmatpush.bf16.msra.mxu0 0
        %671 = vmatpush.bf16.msra.mxu0 0
        %672 = vmatpush.bf16.msra.mxu0 0
        %673 = vmatpush.bf16.msra.mxu0 0
        %674 = vmatpush.bf16.msra.mxu0 %v626
        %675 = vmatmul.bf16.gmra.mxu0 %v614
        %v676 = vpop.f32.mrf.mxu0
        %v677 = vadd.f32 0.0, %v676
        %v678 = vpop.f32.mrf.mxu0
        %679 = vdwg.mxu0
        %v680 = vadd.f32 %v580, %v638
        %v681 = vadd.f32 %v581, %v651
        %v682 = vadd.f32 %v582, %v664
        %v683 = vadd.f32 %v583, %v677
        %s684 = scalar_lea.vmem %s1, 28
        %v685 = vld [vmem:[%s684] sm:$0xf]
        %686 = vst [vmem:[#allocation1] ss:$4 sm:$0xff] %v257
        %s687 = scalar_lea.vmem [#allocation1], 32
        %688 = vst [vmem:[%s687] ss:$4 sm:$0xff] %v258
        %v689 = vld.sshfl [vmem:[#allocation1 + $0x10] sm:$0xff pattern:$0x73625140]
        %v691 = vld.sshfl [vmem:[#allocation1 + $0x18] sm:$0xff pattern:$0x73625140]
        %v693 = vld.sshfl [vmem:[#allocation1 + $0x20] sm:$0xff pattern:$0x73625140]
        %v695 = vld.sshfl [vmem:[#allocation1 + $0x28] sm:$0xff pattern:$0x73625140]
        %v697 = vld.sshfl [vmem:[#allocation1 + $0x30] sm:$0xff pattern:$0x73625140]
        %699 = vrot.lane.b32.xlu0 %v689, 127
        %v700 = vpop.permute.xlu0 %699
        %701 = vrot.lane.b32.xlu0 %v691, 127
        %v702 = vpop.permute.xlu0 %701
        %703 = vrot.lane.b32.xlu0 %v693, 127
        %v704 = vpop.permute.xlu0 %703
        %705 = vrot.lane.b32.xlu0 %v695, 127
        %v706 = vpop.permute.xlu0 %705
        %707 = vrot.lane.b32.xlu0 %v697, 127
        %v708 = vpop.permute.xlu0 %707
        %v709 = vsel %vm508, %v700, %v702
        %v710 = vsel %vm508, %v702, %v704
        %v711 = vsel %vm508, %v704, %v706
        %v712 = vsel %vm508, %v706, %v708
        %v714 = vsel %vm271, %v685, 0
        %v717 = vand.u32 %v709, %v278
        %v720 = vand.u32 %v710, %v278
        %v723 = vand.u32 %v711, %v278
        %v726 = vand.u32 %v712, %v278
        %728 = vmatpush.bf16.msra.mxu0 0
        %729 = vmatpush.bf16.msra.mxu0 0
        %730 = vmatpush.bf16.msra.mxu0 0
        %731 = vmatpush.bf16.msra.mxu0 0
        %732 = vmatpush.bf16.msra.mxu0 0
        %733 = vmatpush.bf16.msra.mxu0 0
        %734 = vmatpush.bf16.msra.mxu0 0
        %735 = vmatpush.bf16.msra.mxu0 %v717
        %736 = vmatmul.bf16.gmra.mxu0 %v714
        %v737 = vpop.f32.mrf.mxu0
        %v738 = vadd.f32 0.0, %v737
        %v739 = vpop.f32.mrf.mxu0
        %740 = vdwg.mxu0
        %741 = vmatpush.bf16.msra.mxu0 0
        %742 = vmatpush.bf16.msra.mxu0 0
        %743 = vmatpush.bf16.msra.mxu0 0
        %744 = vmatpush.bf16.msra.mxu0 0
        %745 = vmatpush.bf16.msra.mxu0 0
        %746 = vmatpush.bf16.msra.mxu0 0
        %747 = vmatpush.bf16.msra.mxu0 0
        %748 = vmatpush.bf16.msra.mxu0 %v720
        %749 = vmatmul.bf16.gmra.mxu0 %v714
        %v750 = vpop.f32.mrf.mxu0
        %v751 = vadd.f32 0.0, %v750
        %v752 = vpop.f32.mrf.mxu0
        %753 = vdwg.mxu0
        %754 = vmatpush.bf16.msra.mxu0 0
        %755 = vmatpush.bf16.msra.mxu0 0
        %756 = vmatpush.bf16.msra.mxu0 0
        %757 = vmatpush.bf16.msra.mxu0 0
        %758 = vmatpush.bf16.msra.mxu0 0
        %759 = vmatpush.bf16.msra.mxu0 0
        %760 = vmatpush.bf16.msra.mxu0 0
        %761 = vmatpush.bf16.msra.mxu0 %v723
        %762 = vmatmul.bf16.gmra.mxu0 %v714
        %v763 = vpop.f32.mrf.mxu0
        %v764 = vadd.f32 0.0, %v763
        %v765 = vpop.f32.mrf.mxu0
        %766 = vdwg.mxu0
        %767 = vmatpush.bf16.msra.mxu0 0
        %768 = vmatpush.bf16.msra.mxu0 0
        %769 = vmatpush.bf16.msra.mxu0 0
        %770 = vmatpush.bf16.msra.mxu0 0
        %771 = vmatpush.bf16.msra.mxu0 0
        %772 = vmatpush.bf16.msra.mxu0 0
        %773 = vmatpush.bf16.msra.mxu0 0
        %774 = vmatpush.bf16.msra.mxu0 %v726
        %775 = vmatmul.bf16.gmra.mxu0 %v714
        %v776 = vpop.f32.mrf.mxu0
        %v777 = vadd.f32 0.0, %v776
        %v778 = vpop.f32.mrf.mxu0
        %779 = vdwg.mxu0
        %v780 = vadd.f32 %v680, %v738
        %v781 = vadd.f32 %v681, %v751
        %v782 = vadd.f32 %v682, %v764
        %v783 = vadd.f32 %v683, %v777
        %s784 = scalar_lea.vmem %s1, 8
        %v785 = vld [vmem:[%s784] sm:$0xf]
        %786 = vst [vmem:[#allocation1] ss:$4 sm:$0xff] %v257
        %s787 = scalar_lea.vmem [#allocation1], 32
        %788 = vst [vmem:[%s787] ss:$4 sm:$0xff] %v258
        %v789 = vld.sshfl [vmem:[#allocation1] sm:$0xff pattern:$0x73625140]
        %v791 = vld.sshfl [vmem:[#allocation1 + $0x8] sm:$0xff pattern:$0x73625140]
        %v793 = vld.sshfl [vmem:[#allocation1 + $0x10] sm:$0xff pattern:$0x73625140]
        %v795 = vld.sshfl [vmem:[#allocation1 + $0x18] sm:$0xff pattern:$0x73625140]
        %v797 = vld.sshfl [vmem:[#allocation1 + $0x20] sm:$0xff pattern:$0x73625140]
        %799 = vrot.lane.b32.xlu0 %v789, 126
        %v800 = vpop.permute.xlu0 %799
        %801 = vrot.lane.b32.xlu0 %v791, 126
        %v802 = vpop.permute.xlu0 %801
        %803 = vrot.lane.b32.xlu0 %v793, 126
        %v804 = vpop.permute.xlu0 %803
        %805 = vrot.lane.b32.xlu0 %v795, 126
        %v806 = vpop.permute.xlu0 %805
        %807 = vrot.lane.b32.xlu0 %v797, 126
        %v808 = vpop.permute.xlu0 %807
        %vm809 = vcmask 1031168
        %v810 = vsel %vm809, %v800, %v802
        %v811 = vsel %vm809, %v802, %v804
        %v812 = vsel %vm809, %v804, %v806
        %v813 = vsel %vm809, %v806, %v808
        %v815 = vsel %vm271, %v785, 0
        %v818 = vand.u32 %v810, %v278
        %v821 = vand.u32 %v811, %v278
        %v824 = vand.u32 %v812, %v278
        %v827 = vand.u32 %v813, %v278
        %829 = vmatpush.bf16.msra.mxu0 0
        %830 = vmatpush.bf16.msra.mxu0 0
        %831 = vmatpush.bf16.msra.mxu0 0
        %832 = vmatpush.bf16.msra.mxu0 0
        %833 = vmatpush.bf16.msra.mxu0 0
        %834 = vmatpush.bf16.msra.mxu0 0
        %835 = vmatpush.bf16.msra.mxu0 0
        %836 = vmatpush.bf16.msra.mxu0 %v818
        %837 = vmatmul.bf16.gmra.mxu0 %v815
        %v838 = vpop.f32.mrf.mxu0
        %v839 = vadd.f32 0.0, %v838
        %v840 = vpop.f32.mrf.mxu0
        %841 = vdwg.mxu0
        %842 = vmatpush.bf16.msra.mxu0 0
        %843 = vmatpush.bf16.msra.mxu0 0
        %844 = vmatpush.bf16.msra.mxu0 0
        %845 = vmatpush.bf16.msra.mxu0 0
        %846 = vmatpush.bf16.msra.mxu0 0
        %847 = vmatpush.bf16.msra.mxu0 0
        %848 = vmatpush.bf16.msra.mxu0 0
        %849 = vmatpush.bf16.msra.mxu0 %v821
        %850 = vmatmul.bf16.gmra.mxu0 %v815
        %v851 = vpop.f32.mrf.mxu0
        %v852 = vadd.f32 0.0, %v851
        %v853 = vpop.f32.mrf.mxu0
        %854 = vdwg.mxu0
        %855 = vmatpush.bf16.msra.mxu0 0
        %856 = vmatpush.bf16.msra.mxu0 0
        %857 = vmatpush.bf16.msra.mxu0 0
        %858 = vmatpush.bf16.msra.mxu0 0
        %859 = vmatpush.bf16.msra.mxu0 0
        %860 = vmatpush.bf16.msra.mxu0 0
        %861 = vmatpush.bf16.msra.mxu0 0
        %862 = vmatpush.bf16.msra.mxu0 %v824
        %863 = vmatmul.bf16.gmra.mxu0 %v815
        %v864 = vpop.f32.mrf.mxu0
        %v865 = vadd.f32 0.0, %v864
        %v866 = vpop.f32.mrf.mxu0
        %867 = vdwg.mxu0
        %868 = vmatpush.bf16.msra.mxu0 0
        %869 = vmatpush.bf16.msra.mxu0 0
        %870 = vmatpush.bf16.msra.mxu0 0
        %871 = vmatpush.bf16.msra.mxu0 0
        %872 = vmatpush.bf16.msra.mxu0 0
        %873 = vmatpush.bf16.msra.mxu0 0
        %874 = vmatpush.bf16.msra.mxu0 0
        %875 = vmatpush.bf16.msra.mxu0 %v827
        %876 = vmatmul.bf16.gmra.mxu0 %v815
        %v877 = vpop.f32.mrf.mxu0
        %v878 = vadd.f32 0.0, %v877
        %v879 = vpop.f32.mrf.mxu0
        %880 = vdwg.mxu0
        %v881 = vadd.f32 %v780, %v839
        %v882 = vadd.f32 %v781, %v852
        %v883 = vadd.f32 %v782, %v865
        %v884 = vadd.f32 %v783, %v878
        %s885 = scalar_lea.vmem %s1, 20
        %v886 = vld [vmem:[%s885] sm:$0xf]
        %887 = vst [vmem:[#allocation1] ss:$4 sm:$0xff] %v257
        %s888 = scalar_lea.vmem [#allocation1], 32
        %889 = vst [vmem:[%s888] ss:$4 sm:$0xff] %v258
        %v890 = vld.sshfl [vmem:[#allocation1 + $0x8] sm:$0xff pattern:$0x73625140]
        %v892 = vld.sshfl [vmem:[#allocation1 + $0x10] sm:$0xff pattern:$0x73625140]
        %v894 = vld.sshfl [vmem:[#allocation1 + $0x18] sm:$0xff pattern:$0x73625140]
        %v896 = vld.sshfl [vmem:[#allocation1 + $0x20] sm:$0xff pattern:$0x73625140]
        %v898 = vld.sshfl [vmem:[#allocation1 + $0x28] sm:$0xff pattern:$0x73625140]
        %900 = vrot.lane.b32.xlu0 %v890, 126
        %v901 = vpop.permute.xlu0 %900
        %902 = vrot.lane.b32.xlu0 %v892, 126
        %v903 = vpop.permute.xlu0 %902
        %904 = vrot.lane.b32.xlu0 %v894, 126
        %v905 = vpop.permute.xlu0 %904
        %906 = vrot.lane.b32.xlu0 %v896, 126
        %v907 = vpop.permute.xlu0 %906
        %908 = vrot.lane.b32.xlu0 %v898, 126
        %v909 = vpop.permute.xlu0 %908
        %v910 = vsel %vm809, %v901, %v903
        %v911 = vsel %vm809, %v903, %v905
        %v912 = vsel %vm809, %v905, %v907
        %v913 = vsel %vm809, %v907, %v909
        %v915 = vsel %vm271, %v886, 0
        %v918 = vand.u32 %v910, %v278
        %v921 = vand.u32 %v911, %v278
        %v924 = vand.u32 %v912, %v278
        %v927 = vand.u32 %v913, %v278
        %929 = vmatpush.bf16.msra.mxu0 0
        %930 = vmatpush.bf16.msra.mxu0 0
        %931 = vmatpush.bf16.msra.mxu0 0
        %932 = vmatpush.bf16.msra.mxu0 0
        %933 = vmatpush.bf16.msra.mxu0 0
        %934 = vmatpush.bf16.msra.mxu0 0
        %935 = vmatpush.bf16.msra.mxu0 0
        %936 = vmatpush.bf16.msra.mxu0 %v918
        %937 = vmatmul.bf16.gmra.mxu0 %v915
        %v938 = vpop.f32.mrf.mxu0
        %v939 = vadd.f32 0.0, %v938
        %v940 = vpop.f32.mrf.mxu0
        %941 = vdwg.mxu0
        %942 = vmatpush.bf16.msra.mxu0 0
        %943 = vmatpush.bf16.msra.mxu0 0
        %944 = vmatpush.bf16.msra.mxu0 0
        %945 = vmatpush.bf16.msra.mxu0 0
        %946 = vmatpush.bf16.msra.mxu0 0
        %947 = vmatpush.bf16.msra.mxu0 0
        %948 = vmatpush.bf16.msra.mxu0 0
        %949 = vmatpush.bf16.msra.mxu0 %v921
        %950 = vmatmul.bf16.gmra.mxu0 %v915
        %v951 = vpop.f32.mrf.mxu0
        %v952 = vadd.f32 0.0, %v951
        %v953 = vpop.f32.mrf.mxu0
        %954 = vdwg.mxu0
        %955 = vmatpush.bf16.msra.mxu0 0
        %956 = vmatpush.bf16.msra.mxu0 0
        %957 = vmatpush.bf16.msra.mxu0 0
        %958 = vmatpush.bf16.msra.mxu0 0
        %959 = vmatpush.bf16.msra.mxu0 0
        %960 = vmatpush.bf16.msra.mxu0 0
        %961 = vmatpush.bf16.msra.mxu0 0
        %962 = vmatpush.bf16.msra.mxu0 %v924
        %963 = vmatmul.bf16.gmra.mxu0 %v915
        %v964 = vpop.f32.mrf.mxu0
        %v965 = vadd.f32 0.0, %v964
        %v966 = vpop.f32.mrf.mxu0
        %967 = vdwg.mxu0
        %968 = vmatpush.bf16.msra.mxu0 0
        %969 = vmatpush.bf16.msra.mxu0 0
        %970 = vmatpush.bf16.msra.mxu0 0
        %971 = vmatpush.bf16.msra.mxu0 0
        %972 = vmatpush.bf16.msra.mxu0 0
        %973 = vmatpush.bf16.msra.mxu0 0
        %974 = vmatpush.bf16.msra.mxu0 0
        %975 = vmatpush.bf16.msra.mxu0 %v927
        %976 = vmatmul.bf16.gmra.mxu0 %v915
        %v977 = vpop.f32.mrf.mxu0
        %v978 = vadd.f32 0.0, %v977
        %v979 = vpop.f32.mrf.mxu0
        %980 = vdwg.mxu0
        %v981 = vadd.f32 %v881, %v939
        %v982 = vadd.f32 %v882, %v952
        %v983 = vadd.f32 %v883, %v965
        %v984 = vadd.f32 %v884, %v978
        %s985 = scalar_lea.vmem %s1, 32
        %v986 = vld [vmem:[%s985] sm:$0xf]
        %987 = vst [vmem:[#allocation1] ss:$4 sm:$0xff] %v257
        %s988 = scalar_lea.vmem [#allocation1], 32
        %989 = vst [vmem:[%s988] ss:$4 sm:$0xff] %v258
        %v990 = vld.sshfl [vmem:[#allocation1 + $0x10] sm:$0xff pattern:$0x73625140]
        %v992 = vld.sshfl [vmem:[#allocation1 + $0x18] sm:$0xff pattern:$0x73625140]
        %v994 = vld.sshfl [vmem:[#allocation1 + $0x20] sm:$0xff pattern:$0x73625140]
        %v996 = vld.sshfl [vmem:[#allocation1 + $0x28] sm:$0xff pattern:$0x73625140]
        %v998 = vld.sshfl [vmem:[#allocation1 + $0x30] sm:$0xff pattern:$0x73625140]
        %1000 = vrot.lane.b32.xlu0 %v990, 126
        %v1001 = vpop.permute.xlu0 %1000
        %1002 = vrot.lane.b32.xlu0 %v992, 126
        %v1003 = vpop.permute.xlu0 %1002
        %1004 = vrot.lane.b32.xlu0 %v994, 126
        %v1005 = vpop.permute.xlu0 %1004
        %1006 = vrot.lane.b32.xlu0 %v996, 126
        %v1007 = vpop.permute.xlu0 %1006
        %1008 = vrot.lane.b32.xlu0 %v998, 126
        %v1009 = vpop.permute.xlu0 %1008
        %v1010 = vsel %vm809, %v1001, %v1003
        %v1011 = vsel %vm809, %v1003, %v1005
        %v1012 = vsel %vm809, %v1005, %v1007
        %v1013 = vsel %vm809, %v1007, %v1009
        %v1015 = vsel %vm271, %v986, 0
        %v1018 = vand.u32 %v1010, %v278
        %v1021 = vand.u32 %v1011, %v278
        %v1024 = vand.u32 %v1012, %v278
        %v1027 = vand.u32 %v1013, %v278
        %1029 = vmatpush.bf16.msra.mxu0 0
        %1030 = vmatpush.bf16.msra.mxu0 0
        %1031 = vmatpush.bf16.msra.mxu0 0
        %1032 = vmatpush.bf16.msra.mxu0 0
        %1033 = vmatpush.bf16.msra.mxu0 0
        %1034 = vmatpush.bf16.msra.mxu0 0
        %1035 = vmatpush.bf16.msra.mxu0 0
        %1036 = vmatpush.bf16.msra.mxu0 %v1018
        %1037 = vmatmul.bf16.gmra.mxu0 %v1015
        %v1038 = vpop.f32.mrf.mxu0
        %v1039 = vadd.f32 0.0, %v1038
        %v1040 = vpop.f32.mrf.mxu0
        %1041 = vdwg.mxu0
        %1042 = vmatpush.bf16.msra.mxu0 0
        %1043 = vmatpush.bf16.msra.mxu0 0
        %1044 = vmatpush.bf16.msra.mxu0 0
        %1045 = vmatpush.bf16.msra.mxu0 0
        %1046 = vmatpush.bf16.msra.mxu0 0
        %1047 = vmatpush.bf16.msra.mxu0 0
        %1048 = vmatpush.bf16.msra.mxu0 0
        %1049 = vmatpush.bf16.msra.mxu0 %v1021
        %1050 = vmatmul.bf16.gmra.mxu0 %v1015
        %v1051 = vpop.f32.mrf.mxu0
        %v1052 = vadd.f32 0.0, %v1051
        %v1053 = vpop.f32.mrf.mxu0
        %1054 = vdwg.mxu0
        %1055 = vmatpush.bf16.msra.mxu0 0
        %1056 = vmatpush.bf16.msra.mxu0 0
        %1057 = vmatpush.bf16.msra.mxu0 0
        %1058 = vmatpush.bf16.msra.mxu0 0
        %1059 = vmatpush.bf16.msra.mxu0 0
        %1060 = vmatpush.bf16.msra.mxu0 0
        %1061 = vmatpush.bf16.msra.mxu0 0
        %1062 = vmatpush.bf16.msra.mxu0 %v1024
        %1063 = vmatmul.bf16.gmra.mxu0 %v1015
        %v1064 = vpop.f32.mrf.mxu0
        %v1065 = vadd.f32 0.0, %v1064
        %v1066 = vpop.f32.mrf.mxu0
        %1067 = vdwg.mxu0
        %1068 = vmatpush.bf16.msra.mxu0 0
        %1069 = vmatpush.bf16.msra.mxu0 0
        %1070 = vmatpush.bf16.msra.mxu0 0
        %1071 = vmatpush.bf16.msra.mxu0 0
        %1072 = vmatpush.bf16.msra.mxu0 0
        %1073 = vmatpush.bf16.msra.mxu0 0
        %1074 = vmatpush.bf16.msra.mxu0 0
        %1075 = vmatpush.bf16.msra.mxu0 %v1027
        %1076 = vmatmul.bf16.gmra.mxu0 %v1015
        %v1077 = vpop.f32.mrf.mxu0
        %v1078 = vadd.f32 0.0, %v1077
        %v1079 = vpop.f32.mrf.mxu0
        %1080 = vdwg.mxu0
        %v1081 = vadd.f32 %v981, %v1039
        %v1082 = vadd.f32 %v982, %v1052
        %v1083 = vadd.f32 %v983, %v1065
        %v1084 = vadd.f32 %v984, %v1078
        %v1085 = vadd.f32 %v1081, %v243
        %v1086 = vadd.f32 %v1082, %v243
        %v1087 = vadd.f32 %v1083, %v243
        %v1088 = vadd.f32 %v1084, %v243
        %v1089 = vmax.f32 %v1085, 0.0
        %v1090 = vmax.f32 %v1086, 0.0
        %v1091 = vmax.f32 %v1087, 0.0
        %v1092 = vmax.f32 %v1088, 0.0
        %v1093 = vpack.c.bf16 %v1089, %v1089
        %v1094 = vpack.c.bf16 %v1090, %v1090
        %v1095 = vpack.c.bf16 %v1091, %v1091
        %v1096 = vpack.c.bf16 %v1092, %v1092
        %vm1097 = vcmask 64512
        %v1099 = vsel %vm1097, %v251, 0
        %vm1101 = vcmask 1043456
        %v1103 = vsel %vm1101, %v1093, 0
        %v1106 = vsel %vm1101, %v1094, 0
        %v1109 = vsel %vm1101, %v1095, 0
        %v1112 = vsel %vm1101, %v1096, 0
        %1114 = vmatpush.bf16.msra.mxu0 0
        %1115 = vmatpush.bf16.msra.mxu0 0
        %1116 = vmatpush.bf16.msra.mxu0 0
        %1117 = vmatpush.bf16.msra.mxu0 0
        %1118 = vmatpush.bf16.msra.mxu0 0
        %1119 = vmatpush.bf16.msra.mxu0 0
        %1120 = vmatpush.bf16.msra.mxu0 0
        %1121 = vmatpush.bf16.msra.mxu0 %v1103
        %1122 = vmatmul.bf16.gmra.mxu0 %v1099
        %v1123 = vpop.f32.mrf.mxu0
        %v1124 = vadd.f32 %v249, %v1123
        %v1125 = vpop.f32.mrf.mxu0
        %1126 = vdwg.mxu0
        %1127 = vmatpush.bf16.msra.mxu0 0
        %1128 = vmatpush.bf16.msra.mxu0 0
        %1129 = vmatpush.bf16.msra.mxu0 0
        %1130 = vmatpush.bf16.msra.mxu0 0
        %1131 = vmatpush.bf16.msra.mxu0 0
        %1132 = vmatpush.bf16.msra.mxu0 0
        %1133 = vmatpush.bf16.msra.mxu0 0
        %1134 = vmatpush.bf16.msra.mxu0 %v1106
        %1135 = vmatmul.bf16.gmra.mxu0 %v1099
        %v1136 = vpop.f32.mrf.mxu0
        %v1137 = vadd.f32 %v249, %v1136
        %v1138 = vpop.f32.mrf.mxu0
        %1139 = vdwg.mxu0
        %1140 = vmatpush.bf16.msra.mxu0 0
        %1141 = vmatpush.bf16.msra.mxu0 0
        %1142 = vmatpush.bf16.msra.mxu0 0
        %1143 = vmatpush.bf16.msra.mxu0 0
        %1144 = vmatpush.bf16.msra.mxu0 0
        %1145 = vmatpush.bf16.msra.mxu0 0
        %1146 = vmatpush.bf16.msra.mxu0 0
        %1147 = vmatpush.bf16.msra.mxu0 %v1109
        %1148 = vmatmul.bf16.gmra.mxu0 %v1099
        %v1149 = vpop.f32.mrf.mxu0
        %v1150 = vadd.f32 %v249, %v1149
        %v1151 = vpop.f32.mrf.mxu0
        %1152 = vdwg.mxu0
        %1153 = vmatpush.bf16.msra.mxu0 0
        %1154 = vmatpush.bf16.msra.mxu0 0
        %1155 = vmatpush.bf16.msra.mxu0 0
        %1156 = vmatpush.bf16.msra.mxu0 0
        %1157 = vmatpush.bf16.msra.mxu0 0
        %1158 = vmatpush.bf16.msra.mxu0 0
        %1159 = vmatpush.bf16.msra.mxu0 0
        %1160 = vmatpush.bf16.msra.mxu0 %v1112
        %1161 = vmatmul.bf16.gmra.mxu0 %v1099
        %v1162 = vpop.f32.mrf.mxu0
        %v1163 = vadd.f32 %v249, %v1162
        %v1164 = vpop.f32.mrf.mxu0
        %1165 = vdwg.mxu0
        %v1166 = vsub.f32 0.0, %v1124
        %v1167 = vsub.f32 0.0, %v1137
        %v1168 = vsub.f32 0.0, %v1150
        %v1169 = vsub.f32 0.0, %v1163
        %v1170 = vmul.f32 %v1166, 1.442695
        %v1171 = vpow.pop %v1170
        %v1172 = vmul.f32 %v1167, 1.442695
        %v1173 = vpow.pop %v1172
        %v1174 = vmul.f32 %v1168, 1.442695
        %v1175 = vpow.pop %v1174
        %v1176 = vmul.f32 %v1169, 1.442695
        %v1177 = vpow.pop %v1176
        %v1178 = vadd.f32 %v1171, 1.0
        %v1179 = vadd.f32 %v1173, 1.0
        %v1180 = vadd.f32 %v1175, 1.0
        %v1181 = vadd.f32 %v1177, 1.0
        %v1182 = vrcp.pop %v1178
        %v1183 = vrcp.pop %v1179
        %v1184 = vrcp.pop %v1180
        %v1185 = vrcp.pop %v1181
        %v1186 = vmin.f32 %v1182, 1.0
        %v1187 = vmin.f32 %v1183, 1.0
        %v1188 = vmin.f32 %v1184, 1.0
        %v1189 = vmin.f32 %v1185, 1.0
        %v1190 = vpack.c.bf16 %v1187, %v1186
        %v1191 = vpack.c.bf16 %v1189, %v1188
        %1192 = vst [vmem:[%s231] sm:$0xff] %v1190
        %1193 = vst [vmem:[%s231 + $0x8] sm:$0xff] %v1191
        %s1194 = sadd.s32 %s252, 512
        %s1195 = sshra.s32 %s1194, 7
        %s1196 = sand.u32 %s1194, 127
        %s1197 = smul.addr %s1195, 2
        %s1198 = scalar_lea.vmem %s236, %s1197
        %v1199 = vld [vmem:[%s1198] sm:$0xff]
        %v1200 = vld [vmem:[%s1198 + $0x8] sm:$0x3f]
        %v1201 = vld [vmem:[%s1] sm:$0xf]
        %v1202 = vld [vmem:[%s260] sm:$0xf]
        %1204 = vst [vmem:[#allocation1] ss:$4 sm:$0xff] %v1199
        %s1206 = scalar_lea.vmem [#allocation1], 32
        %1207 = vst [vmem:[%s1206] ss:$4 sm:$0xff] %v1200
        %v1208 = vld.sshfl [vmem:[#allocation1 + $0x8] sm:$0xff pattern:$0x73625140]
        %v1209 = vld.sshfl [vmem:[#allocation1 + $0x10] sm:$0xff pattern:$0x73625140]
        %v1210 = vld.sshfl [vmem:[#allocation1 + $0x18] sm:$0xff pattern:$0x73625140]
        %v1211 = vld.sshfl [vmem:[#allocation1 + $0x20] sm:$0xff pattern:$0x73625140]
        %v1213 = vsel %vm271, %v1202, 0
        %v1215 = vand.u32 %v1208, %v278
        %v1217 = vand.u32 %v1209, %v278
        %v1219 = vand.u32 %v1210, %v278
        %v1221 = vand.u32 %v1211, %v278
        %1223 = vmatpush.bf16.msra.mxu0 0
        %1224 = vmatpush.bf16.msra.mxu0 0
        %1225 = vmatpush.bf16.msra.mxu0 0
        %1226 = vmatpush.bf16.msra.mxu0 0
        %1227 = vmatpush.bf16.msra.mxu0 0
        %1228 = vmatpush.bf16.msra.mxu0 0
        %1229 = vmatpush.bf16.msra.mxu0 0
        %1230 = vmatpush.bf16.msra.mxu0 %v1215
        %1231 = vmatmul.bf16.gmra.mxu0 %v1213
        %v1232 = vpop.f32.mrf.mxu0
        %v1233 = vadd.f32 0.0, %v1232
        %v1234 = vpop.f32.mrf.mxu0
        %1235 = vdwg.mxu0
        %1236 = vmatpush.bf16.msra.mxu0 0
        %1237 = vmatpush.bf16.msra.mxu0 0
        %1238 = vmatpush.bf16.msra.mxu0 0
        %1239 = vmatpush.bf16.msra.mxu0 0
        %1240 = vmatpush.bf16.msra.mxu0 0
        %1241 = vmatpush.bf16.msra.mxu0 0
        %1242 = vmatpush.bf16.msra.mxu0 0
        %1243 = vmatpush.bf16.msra.mxu0 %v1217
        %1244 = vmatmul.bf16.gmra.mxu0 %v1213
        %v1245 = vpop.f32.mrf.mxu0
        %v1246 = vadd.f32 0.0, %v1245
        %v1247 = vpop.f32.mrf.mxu0
        %1248 = vdwg.mxu0
        %1249 = vmatpush.bf16.msra.mxu0 0
        %1250 = vmatpush.bf16.msra.mxu0 0
        %1251 = vmatpush.bf16.msra.mxu0 0
        %1252 = vmatpush.bf16.msra.mxu0 0
        %1253 = vmatpush.bf16.msra.mxu0 0
        %1254 = vmatpush.bf16.msra.mxu0 0
        %1255 = vmatpush.bf16.msra.mxu0 0
        %1256 = vmatpush.bf16.msra.mxu0 %v1219
        %1257 = vmatmul.bf16.gmra.mxu0 %v1213
        %v1258 = vpop.f32.mrf.mxu0
        %v1259 = vadd.f32 0.0, %v1258
        %v1260 = vpop.f32.mrf.mxu0
        %1261 = vdwg.mxu0
        %1262 = vmatpush.bf16.msra.mxu0 0
        %1263 = vmatpush.bf16.msra.mxu0 0
        %1264 = vmatpush.bf16.msra.mxu0 0
        %1265 = vmatpush.bf16.msra.mxu0 0
        %1266 = vmatpush.bf16.msra.mxu0 0
        %1267 = vmatpush.bf16.msra.mxu0 0
        %1268 = vmatpush.bf16.msra.mxu0 0
        %1269 = vmatpush.bf16.msra.mxu0 %v1221
        %1270 = vmatmul.bf16.gmra.mxu0 %v1213
        %v1271 = vpop.f32.mrf.mxu0
        %v1272 = vadd.f32 0.0, %v1271
        %v1273 = vpop.f32.mrf.mxu0
        %1274 = vdwg.mxu0
        %1275 = vst [vmem:[#allocation1] ss:$4 sm:$0xff] %v1199
        %v1276 = vld.sshfl [vmem:[#allocation1] sm:$0xff pattern:$0x73625140]
        %v1277 = vld.sshfl [vmem:[#allocation1 + $0x8] sm:$0xff pattern:$0x73625140]
        %v1278 = vld.sshfl [vmem:[#allocation1 + $0x10] sm:$0xff pattern:$0x73625140]
        %v1279 = vld.sshfl [vmem:[#allocation1 + $0x18] sm:$0xff pattern:$0x73625140]
        %v1281 = vsel %vm271, %v1201, 0
        %v1283 = vand.u32 %v1276, %v278
        %v1285 = vand.u32 %v1277, %v278
        %v1287 = vand.u32 %v1278, %v278
        %v1289 = vand.u32 %v1279, %v278
        %1291 = vmatpush.bf16.msra.mxu0 0
        %1292 = vmatpush.bf16.msra.mxu0 0
        %1293 = vmatpush.bf16.msra.mxu0 0
        %1294 = vmatpush.bf16.msra.mxu0 0
        %1295 = vmatpush.bf16.msra.mxu0 0
        %1296 = vmatpush.bf16.msra.mxu0 0
        %1297 = vmatpush.bf16.msra.mxu0 0
        %1298 = vmatpush.bf16.msra.mxu0 %v1283
        %1299 = vmatmul.bf16.gmra.mxu0 %v1281
        %v1300 = vpop.f32.mrf.mxu0
        %v1301 = vadd.f32 %v1233, %v1300
        %v1302 = vpop.f32.mrf.mxu0
        %1303 = vdwg.mxu0
        %1304 = vmatpush.bf16.msra.mxu0 0
        %1305 = vmatpush.bf16.msra.mxu0 0
        %1306 = vmatpush.bf16.msra.mxu0 0
        %1307 = vmatpush.bf16.msra.mxu0 0
        %1308 = vmatpush.bf16.msra.mxu0 0
        %1309 = vmatpush.bf16.msra.mxu0 0
        %1310 = vmatpush.bf16.msra.mxu0 0
        %1311 = vmatpush.bf16.msra.mxu0 %v1285
        %1312 = vmatmul.bf16.gmra.mxu0 %v1281
        %v1313 = vpop.f32.mrf.mxu0
        %v1314 = vadd.f32 %v1246, %v1313
        %v1315 = vpop.f32.mrf.mxu0
        %1316 = vdwg.mxu0
        %1317 = vmatpush.bf16.msra.mxu0 0
        %1318 = vmatpush.bf16.msra.mxu0 0
        %1319 = vmatpush.bf16.msra.mxu0 0
        %1320 = vmatpush.bf16.msra.mxu0 0
        %1321 = vmatpush.bf16.msra.mxu0 0
        %1322 = vmatpush.bf16.msra.mxu0 0
        %1323 = vmatpush.bf16.msra.mxu0 0
        %1324 = vmatpush.bf16.msra.mxu0 %v1287
        %1325 = vmatmul.bf16.gmra.mxu0 %v1281
        %v1326 = vpop.f32.mrf.mxu0
        %v1327 = vadd.f32 %v1259, %v1326
        %v1328 = vpop.f32.mrf.mxu0
        %1329 = vdwg.mxu0
        %1330 = vmatpush.bf16.msra.mxu0 0
        %1331 = vmatpush.bf16.msra.mxu0 0
        %1332 = vmatpush.bf16.msra.mxu0 0
        %1333 = vmatpush.bf16.msra.mxu0 0
        %1334 = vmatpush.bf16.msra.mxu0 0
        %1335 = vmatpush.bf16.msra.mxu0 0
        %1336 = vmatpush.bf16.msra.mxu0 0
        %1337 = vmatpush.bf16.msra.mxu0 %v1289
        %1338 = vmatmul.bf16.gmra.mxu0 %v1281
        %v1339 = vpop.f32.mrf.mxu0
        %v1340 = vadd.f32 %v1272, %v1339
        %v1341 = vpop.f32.mrf.mxu0
        %1342 = vdwg.mxu0
        %v1343 = vld [vmem:[%s407] sm:$0xf]
        %1344 = vst [vmem:[#allocation1] ss:$4 sm:$0xff] %v1199
        %s1345 = scalar_lea.vmem [#allocation1], 32
        %1346 = vst [vmem:[%s1345] ss:$4 sm:$0xff] %v1200
        %v1347 = vld.sshfl [vmem:[#allocation1 + $0x10] sm:$0xff pattern:$0x73625140]
        %v1348 = vld.sshfl [vmem:[#allocation1 + $0x18] sm:$0xff pattern:$0x73625140]
        %v1349 = vld.sshfl [vmem:[#allocation1 + $0x20] sm:$0xff pattern:$0x73625140]
        %v1350 = vld.sshfl [vmem:[#allocation1 + $0x28] sm:$0xff pattern:$0x73625140]
        %v1352 = vsel %vm271, %v1343, 0
        %v1354 = vand.u32 %v1347, %v278
        %v1356 = vand.u32 %v1348, %v278
        %v1358 = vand.u32 %v1349, %v278
        %v1360 = vand.u32 %v1350, %v278
        %1362 = vmatpush.bf16.msra.mxu0 0
        %1363 = vmatpush.bf16.msra.mxu0 0
        %1364 = vmatpush.bf16.msra.mxu0 0
        %1365 = vmatpush.bf16.msra.mxu0 0
        %1366 = vmatpush.bf16.msra.mxu0 0
        %1367 = vmatpush.bf16.msra.mxu0 0
        %1368 = vmatpush.bf16.msra.mxu0 0
        %1369 = vmatpush.bf16.msra.mxu0 %v1354
        %1370 = vmatmul.bf16.gmra.mxu0 %v1352
        %v1371 = vpop.f32.mrf.mxu0
        %v1372 = vadd.f32 0.0, %v1371
        %v1373 = vpop.f32.mrf.mxu0
        %1374 = vdwg.mxu0
        %1375 = vmatpush.bf16.msra.mxu0 0
        %1376 = vmatpush.bf16.msra.mxu0 0
        %1377 = vmatpush.bf16.msra.mxu0 0
        %1378 = vmatpush.bf16.msra.mxu0 0
        %1379 = vmatpush.bf16.msra.mxu0 0
        %1380 = vmatpush.bf16.msra.mxu0 0
        %1381 = vmatpush.bf16.msra.mxu0 0
        %1382 = vmatpush.bf16.msra.mxu0 %v1356
        %1383 = vmatmul.bf16.gmra.mxu0 %v1352
        %v1384 = vpop.f32.mrf.mxu0
        %v1385 = vadd.f32 0.0, %v1384
        %v1386 = vpop.f32.mrf.mxu0
        %1387 = vdwg.mxu0
        %1388 = vmatpush.bf16.msra.mxu0 0
        %1389 = vmatpush.bf16.msra.mxu0 0
        %1390 = vmatpush.bf16.msra.mxu0 0
        %1391 = vmatpush.bf16.msra.mxu0 0
        %1392 = vmatpush.bf16.msra.mxu0 0
        %1393 = vmatpush.bf16.msra.mxu0 0
        %1394 = vmatpush.bf16.msra.mxu0 0
        %1395 = vmatpush.bf16.msra.mxu0 %v1358
        %1396 = vmatmul.bf16.gmra.mxu0 %v1352
        %v1397 = vpop.f32.mrf.mxu0
        %v1398 = vadd.f32 0.0, %v1397
        %v1399 = vpop.f32.mrf.mxu0
        %1400 = vdwg.mxu0
        %1401 = vmatpush.bf16.msra.mxu0 0
        %1402 = vmatpush.bf16.msra.mxu0 0
        %1403 = vmatpush.bf16.msra.mxu0 0
        %1404 = vmatpush.bf16.msra.mxu0 0
        %1405 = vmatpush.bf16.msra.mxu0 0
        %1406 = vmatpush.bf16.msra.mxu0 0
        %1407 = vmatpush.bf16.msra.mxu0 0
        %1408 = vmatpush.bf16.msra.mxu0 %v1360
        %1409 = vmatmul.bf16.gmra.mxu0 %v1352
        %v1410 = vpop.f32.mrf.mxu0
        %v1411 = vadd.f32 0.0, %v1410
        %v1412 = vpop.f32.mrf.mxu0
        %1413 = vdwg.mxu0
        %v1414 = vadd.f32 %v1301, %v1372
        %v1415 = vadd.f32 %v1314, %v1385
        %v1416 = vadd.f32 %v1327, %v1398
        %v1417 = vadd.f32 %v1340, %v1411
        %v1418 = vld [vmem:[%s483] sm:$0xf]
        %1419 = vst [vmem:[#allocation1] ss:$4 sm:$0xff] %v1199
        %s1420 = scalar_lea.vmem [#allocation1], 32
        %1421 = vst [vmem:[%s1420] ss:$4 sm:$0xff] %v1200
        %v1422 = vld.sshfl [vmem:[#allocation1] sm:$0xff pattern:$0x73625140]
        %v1424 = vld.sshfl [vmem:[#allocation1 + $0x8] sm:$0xff pattern:$0x73625140]
        %v1426 = vld.sshfl [vmem:[#allocation1 + $0x10] sm:$0xff pattern:$0x73625140]
        %v1428 = vld.sshfl [vmem:[#allocation1 + $0x18] sm:$0xff pattern:$0x73625140]
        %v1430 = vld.sshfl [vmem:[#allocation1 + $0x20] sm:$0xff pattern:$0x73625140]
        %1432 = vrot.lane.b32.xlu0 %v1422, 127
        %v1433 = vpop.permute.xlu0 %1432
        %1434 = vrot.lane.b32.xlu0 %v1424, 127
        %v1435 = vpop.permute.xlu0 %1434
        %1436 = vrot.lane.b32.xlu0 %v1426, 127
        %v1437 = vpop.permute.xlu0 %1436
        %1438 = vrot.lane.b32.xlu0 %v1428, 127
        %v1439 = vpop.permute.xlu0 %1438
        %1440 = vrot.lane.b32.xlu0 %v1430, 127
        %v1441 = vpop.permute.xlu0 %1440
        %v1442 = vsel %vm508, %v1433, %v1435
        %v1443 = vsel %vm508, %v1435, %v1437
        %v1444 = vsel %vm508, %v1437, %v1439
        %v1445 = vsel %vm508, %v1439, %v1441
        %v1447 = vsel %vm271, %v1418, 0
        %v1450 = vand.u32 %v1442, %v278
        %v1453 = vand.u32 %v1443, %v278
        %v1456 = vand.u32 %v1444, %v278
        %v1459 = vand.u32 %v1445, %v278
        %1461 = vmatpush.bf16.msra.mxu0 0
        %1462 = vmatpush.bf16.msra.mxu0 0
        %1463 = vmatpush.bf16.msra.mxu0 0
        %1464 = vmatpush.bf16.msra.mxu0 0
        %1465 = vmatpush.bf16.msra.mxu0 0
        %1466 = vmatpush.bf16.msra.mxu0 0
        %1467 = vmatpush.bf16.msra.mxu0 0
        %1468 = vmatpush.bf16.msra.mxu0 %v1450
        %1469 = vmatmul.bf16.gmra.mxu0 %v1447
        %v1470 = vpop.f32.mrf.mxu0
        %v1471 = vadd.f32 0.0, %v1470
        %v1472 = vpop.f32.mrf.mxu0
        %1473 = vdwg.mxu0
        %1474 = vmatpush.bf16.msra.mxu0 0
        %1475 = vmatpush.bf16.msra.mxu0 0
        %1476 = vmatpush.bf16.msra.mxu0 0
        %1477 = vmatpush.bf16.msra.mxu0 0
        %1478 = vmatpush.bf16.msra.mxu0 0
        %1479 = vmatpush.bf16.msra.mxu0 0
        %1480 = vmatpush.bf16.msra.mxu0 0
        %1481 = vmatpush.bf16.msra.mxu0 %v1453
        %1482 = vmatmul.bf16.gmra.mxu0 %v1447
        %v1483 = vpop.f32.mrf.mxu0
        %v1484 = vadd.f32 0.0, %v1483
        %v1485 = vpop.f32.mrf.mxu0
        %1486 = vdwg.mxu0
        %1487 = vmatpush.bf16.msra.mxu0 0
        %1488 = vmatpush.bf16.msra.mxu0 0
        %1489 = vmatpush.bf16.msra.mxu0 0
        %1490 = vmatpush.bf16.msra.mxu0 0
        %1491 = vmatpush.bf16.msra.mxu0 0
        %1492 = vmatpush.bf16.msra.mxu0 0
        %1493 = vmatpush.bf16.msra.mxu0 0
        %1494 = vmatpush.bf16.msra.mxu0 %v1456
        %1495 = vmatmul.bf16.gmra.mxu0 %v1447
        %v1496 = vpop.f32.mrf.mxu0
        %v1497 = vadd.f32 0.0, %v1496
        %v1498 = vpop.f32.mrf.mxu0
        %1499 = vdwg.mxu0
        %1500 = vmatpush.bf16.msra.mxu0 0
        %1501 = vmatpush.bf16.msra.mxu0 0
        %1502 = vmatpush.bf16.msra.mxu0 0
        %1503 = vmatpush.bf16.msra.mxu0 0
        %1504 = vmatpush.bf16.msra.mxu0 0
        %1505 = vmatpush.bf16.msra.mxu0 0
        %1506 = vmatpush.bf16.msra.mxu0 0
        %1507 = vmatpush.bf16.msra.mxu0 %v1459
        %1508 = vmatmul.bf16.gmra.mxu0 %v1447
        %v1509 = vpop.f32.mrf.mxu0
        %v1510 = vadd.f32 0.0, %v1509
        %v1511 = vpop.f32.mrf.mxu0
        %1512 = vdwg.mxu0
        %v1513 = vadd.f32 %v1414, %v1471
        %v1514 = vadd.f32 %v1415, %v1484
        %v1515 = vadd.f32 %v1416, %v1497
        %v1516 = vadd.f32 %v1417, %v1510
        %v1517 = vld [vmem:[%s584] sm:$0xf]
        %1518 = vst [vmem:[#allocation1] ss:$4 sm:$0xff] %v1199
        %s1519 = scalar_lea.vmem [#allocation1], 32
        %1520 = vst [vmem:[%s1519] ss:$4 sm:$0xff] %v1200
        %v1521 = vld.sshfl [vmem:[#allocation1 + $0x8] sm:$0xff pattern:$0x73625140]
        %v1523 = vld.sshfl [vmem:[#allocation1 + $0x10] sm:$0xff pattern:$0x73625140]
        %v1525 = vld.sshfl [vmem:[#allocation1 + $0x18] sm:$0xff pattern:$0x73625140]
        %v1527 = vld.sshfl [vmem:[#allocation1 + $0x20] sm:$0xff pattern:$0x73625140]
        %v1529 = vld.sshfl [vmem:[#allocation1 + $0x28] sm:$0xff pattern:$0x73625140]
        %1531 = vrot.lane.b32.xlu0 %v1521, 127
        %v1532 = vpop.permute.xlu0 %1531
        %1533 = vrot.lane.b32.xlu0 %v1523, 127
        %v1534 = vpop.permute.xlu0 %1533
        %1535 = vrot.lane.b32.xlu0 %v1525, 127
        %v1536 = vpop.permute.xlu0 %1535
        %1537 = vrot.lane.b32.xlu0 %v1527, 127
        %v1538 = vpop.permute.xlu0 %1537
        %1539 = vrot.lane.b32.xlu0 %v1529, 127
        %v1540 = vpop.permute.xlu0 %1539
        %v1541 = vsel %vm508, %v1532, %v1534
        %v1542 = vsel %vm508, %v1534, %v1536
        %v1543 = vsel %vm508, %v1536, %v1538
        %v1544 = vsel %vm508, %v1538, %v1540
        %v1546 = vsel %vm271, %v1517, 0
        %v1549 = vand.u32 %v1541, %v278
        %v1552 = vand.u32 %v1542, %v278
        %v1555 = vand.u32 %v1543, %v278
        %v1558 = vand.u32 %v1544, %v278
        %1560 = vmatpush.bf16.msra.mxu0 0
        %1561 = vmatpush.bf16.msra.mxu0 0
        %1562 = vmatpush.bf16.msra.mxu0 0
        %1563 = vmatpush.bf16.msra.mxu0 0
        %1564 = vmatpush.bf16.msra.mxu0 0
        %1565 = vmatpush.bf16.msra.mxu0 0
        %1566 = vmatpush.bf16.msra.mxu0 0
        %1567 = vmatpush.bf16.msra.mxu0 %v1549
        %1568 = vmatmul.bf16.gmra.mxu0 %v1546
        %v1569 = vpop.f32.mrf.mxu0
        %v1570 = vadd.f32 0.0, %v1569
        %v1571 = vpop.f32.mrf.mxu0
        %1572 = vdwg.mxu0
        %1573 = vmatpush.bf16.msra.mxu0 0
        %1574 = vmatpush.bf16.msra.mxu0 0
        %1575 = vmatpush.bf16.msra.mxu0 0
        %1576 = vmatpush.bf16.msra.mxu0 0
        %1577 = vmatpush.bf16.msra.mxu0 0
        %1578 = vmatpush.bf16.msra.mxu0 0
        %1579 = vmatpush.bf16.msra.mxu0 0
        %1580 = vmatpush.bf16.msra.mxu0 %v1552
        %1581 = vmatmul.bf16.gmra.mxu0 %v1546
        %v1582 = vpop.f32.mrf.mxu0
        %v1583 = vadd.f32 0.0, %v1582
        %v1584 = vpop.f32.mrf.mxu0
        %1585 = vdwg.mxu0
        %1586 = vmatpush.bf16.msra.mxu0 0
        %1587 = vmatpush.bf16.msra.mxu0 0
        %1588 = vmatpush.bf16.msra.mxu0 0
        %1589 = vmatpush.bf16.msra.mxu0 0
        %1590 = vmatpush.bf16.msra.mxu0 0
        %1591 = vmatpush.bf16.msra.mxu0 0
        %1592 = vmatpush.bf16.msra.mxu0 0
        %1593 = vmatpush.bf16.msra.mxu0 %v1555
        %1594 = vmatmul.bf16.gmra.mxu0 %v1546
        %v1595 = vpop.f32.mrf.mxu0
        %v1596 = vadd.f32 0.0, %v1595
        %v1597 = vpop.f32.mrf.mxu0
        %1598 = vdwg.mxu0
        %1599 = vmatpush.bf16.msra.mxu0 0
        %1600 = vmatpush.bf16.msra.mxu0 0
        %1601 = vmatpush.bf16.msra.mxu0 0
        %1602 = vmatpush.bf16.msra.mxu0 0
        %1603 = vmatpush.bf16.msra.mxu0 0
        %1604 = vmatpush.bf16.msra.mxu0 0
        %1605 = vmatpush.bf16.msra.mxu0 0
        %1606 = vmatpush.bf16.msra.mxu0 %v1558
        %1607 = vmatmul.bf16.gmra.mxu0 %v1546
        %v1608 = vpop.f32.mrf.mxu0
        %v1609 = vadd.f32 0.0, %v1608
        %v1610 = vpop.f32.mrf.mxu0
        %1611 = vdwg.mxu0
        %v1612 = vadd.f32 %v1513, %v1570
        %v1613 = vadd.f32 %v1514, %v1583
        %v1614 = vadd.f32 %v1515, %v1596
        %v1615 = vadd.f32 %v1516, %v1609
        %v1616 = vld [vmem:[%s684] sm:$0xf]
        %1617 = vst [vmem:[#allocation1] ss:$4 sm:$0xff] %v1199
        %s1618 = scalar_lea.vmem [#allocation1], 32
        %1619 = vst [vmem:[%s1618] ss:$4 sm:$0xff] %v1200
        %v1620 = vld.sshfl [vmem:[#allocation1 + $0x10] sm:$0xff pattern:$0x73625140]
        %v1622 = vld.sshfl [vmem:[#allocation1 + $0x18] sm:$0xff pattern:$0x73625140]
        %v1624 = vld.sshfl [vmem:[#allocation1 + $0x20] sm:$0xff pattern:$0x73625140]
        %v1626 = vld.sshfl [vmem:[#allocation1 + $0x28] sm:$0xff pattern:$0x73625140]
        %v1628 = vld.sshfl [vmem:[#allocation1 + $0x30] sm:$0xff pattern:$0x73625140]
        %1630 = vrot.lane.b32.xlu0 %v1620, 127
        %v1631 = vpop.permute.xlu0 %1630
        %1632 = vrot.lane.b32.xlu0 %v1622, 127
        %v1633 = vpop.permute.xlu0 %1632
        %1634 = vrot.lane.b32.xlu0 %v1624, 127
        %v1635 = vpop.permute.xlu0 %1634
        %1636 = vrot.lane.b32.xlu0 %v1626, 127
        %v1637 = vpop.permute.xlu0 %1636
        %1638 = vrot.lane.b32.xlu0 %v1628, 127
        %v1639 = vpop.permute.xlu0 %1638
        %v1640 = vsel %vm508, %v1631, %v1633
        %v1641 = vsel %vm508, %v1633, %v1635
        %v1642 = vsel %vm508, %v1635, %v1637
        %v1643 = vsel %vm508, %v1637, %v1639
        %v1645 = vsel %vm271, %v1616, 0
        %v1648 = vand.u32 %v1640, %v278
        %v1651 = vand.u32 %v1641, %v278
        %v1654 = vand.u32 %v1642, %v278
        %v1657 = vand.u32 %v1643, %v278
        %1659 = vmatpush.bf16.msra.mxu0 0
        %1660 = vmatpush.bf16.msra.mxu0 0
        %1661 = vmatpush.bf16.msra.mxu0 0
        %1662 = vmatpush.bf16.msra.mxu0 0
        %1663 = vmatpush.bf16.msra.mxu0 0
        %1664 = vmatpush.bf16.msra.mxu0 0
        %1665 = vmatpush.bf16.msra.mxu0 0
        %1666 = vmatpush.bf16.msra.mxu0 %v1648
        %1667 = vmatmul.bf16.gmra.mxu0 %v1645
        %v1668 = vpop.f32.mrf.mxu0
        %v1669 = vadd.f32 0.0, %v1668
        %v1670 = vpop.f32.mrf.mxu0
        %1671 = vdwg.mxu0
        %1672 = vmatpush.bf16.msra.mxu0 0
        %1673 = vmatpush.bf16.msra.mxu0 0
        %1674 = vmatpush.bf16.msra.mxu0 0
        %1675 = vmatpush.bf16.msra.mxu0 0
        %1676 = vmatpush.bf16.msra.mxu0 0
        %1677 = vmatpush.bf16.msra.mxu0 0
        %1678 = vmatpush.bf16.msra.mxu0 0
        %1679 = vmatpush.bf16.msra.mxu0 %v1651
        %1680 = vmatmul.bf16.gmra.mxu0 %v1645
        %v1681 = vpop.f32.mrf.mxu0
        %v1682 = vadd.f32 0.0, %v1681
        %v1683 = vpop.f32.mrf.mxu0
        %1684 = vdwg.mxu0
        %1685 = vmatpush.bf16.msra.mxu0 0
        %1686 = vmatpush.bf16.msra.mxu0 0
        %1687 = vmatpush.bf16.msra.mxu0 0
        %1688 = vmatpush.bf16.msra.mxu0 0
        %1689 = vmatpush.bf16.msra.mxu0 0
        %1690 = vmatpush.bf16.msra.mxu0 0
        %1691 = vmatpush.bf16.msra.mxu0 0
        %1692 = vmatpush.bf16.msra.mxu0 %v1654
        %1693 = vmatmul.bf16.gmra.mxu0 %v1645
        %v1694 = vpop.f32.mrf.mxu0
        %v1695 = vadd.f32 0.0, %v1694
        %v1696 = vpop.f32.mrf.mxu0
        %1697 = vdwg.mxu0
        %1698 = vmatpush.bf16.msra.mxu0 0
        %1699 = vmatpush.bf16.msra.mxu0 0
        %1700 = vmatpush.bf16.msra.mxu0 0
        %1701 = vmatpush.bf16.msra.mxu0 0
        %1702 = vmatpush.bf16.msra.mxu0 0
        %1703 = vmatpush.bf16.msra.mxu0 0
        %1704 = vmatpush.bf16.msra.mxu0 0
        %1705 = vmatpush.bf16.msra.mxu0 %v1657
        %1706 = vmatmul.bf16.gmra.mxu0 %v1645
        %v1707 = vpop.f32.mrf.mxu0
        %v1708 = vadd.f32 0.0, %v1707
        %v1709 = vpop.f32.mrf.mxu0
        %1710 = vdwg.mxu0
        %v1711 = vadd.f32 %v1612, %v1669
        %v1712 = vadd.f32 %v1613, %v1682
        %v1713 = vadd.f32 %v1614, %v1695
        %v1714 = vadd.f32 %v1615, %v1708
        %v1715 = vld [vmem:[%s784] sm:$0xf]
        %1716 = vst [vmem:[#allocation1] ss:$4 sm:$0xff] %v1199
        %s1717 = scalar_lea.vmem [#allocation1], 32
        %1718 = vst [vmem:[%s1717] ss:$4 sm:$0xff] %v1200
        %v1719 = vld.sshfl [vmem:[#allocation1] sm:$0xff pattern:$0x73625140]
        %v1721 = vld.sshfl [vmem:[#allocation1 + $0x8] sm:$0xff pattern:$0x73625140]
        %v1723 = vld.sshfl [vmem:[#allocation1 + $0x10] sm:$0xff pattern:$0x73625140]
        %v1725 = vld.sshfl [vmem:[#allocation1 + $0x18] sm:$0xff pattern:$0x73625140]
        %v1727 = vld.sshfl [vmem:[#allocation1 + $0x20] sm:$0xff pattern:$0x73625140]
        %1729 = vrot.lane.b32.xlu0 %v1719, 126
        %v1730 = vpop.permute.xlu0 %1729
        %1731 = vrot.lane.b32.xlu0 %v1721, 126
        %v1732 = vpop.permute.xlu0 %1731
        %1733 = vrot.lane.b32.xlu0 %v1723, 126
        %v1734 = vpop.permute.xlu0 %1733
        %1735 = vrot.lane.b32.xlu0 %v1725, 126
        %v1736 = vpop.permute.xlu0 %1735
        %1737 = vrot.lane.b32.xlu0 %v1727, 126
        %v1738 = vpop.permute.xlu0 %1737
        %v1739 = vsel %vm809, %v1730, %v1732
        %v1740 = vsel %vm809, %v1732, %v1734
        %v1741 = vsel %vm809, %v1734, %v1736
        %v1742 = vsel %vm809, %v1736, %v1738
        %v1744 = vsel %vm271, %v1715, 0
        %v1747 = vand.u32 %v1739, %v278
        %v1750 = vand.u32 %v1740, %v278
        %v1753 = vand.u32 %v1741, %v278
        %v1756 = vand.u32 %v1742, %v278
        %1758 = vmatpush.bf16.msra.mxu0 0
        %1759 = vmatpush.bf16.msra.mxu0 0
        %1760 = vmatpush.bf16.msra.mxu0 0
        %1761 = vmatpush.bf16.msra.mxu0 0
        %1762 = vmatpush.bf16.msra.mxu0 0
        %1763 = vmatpush.bf16.msra.mxu0 0
        %1764 = vmatpush.bf16.msra.mxu0 0
        %1765 = vmatpush.bf16.msra.mxu0 %v1747
        %1766 = vmatmul.bf16.gmra.mxu0 %v1744
        %v1767 = vpop.f32.mrf.mxu0
        %v1768 = vadd.f32 0.0, %v1767
        %v1769 = vpop.f32.mrf.mxu0
        %1770 = vdwg.mxu0
        %1771 = vmatpush.bf16.msra.mxu0 0
        %1772 = vmatpush.bf16.msra.mxu0 0
        %1773 = vmatpush.bf16.msra.mxu0 0
        %1774 = vmatpush.bf16.msra.mxu0 0
        %1775 = vmatpush.bf16.msra.mxu0 0
        %1776 = vmatpush.bf16.msra.mxu0 0
        %1777 = vmatpush.bf16.msra.mxu0 0
        %1778 = vmatpush.bf16.msra.mxu0 %v1750
        %1779 = vmatmul.bf16.gmra.mxu0 %v1744
        %v1780 = vpop.f32.mrf.mxu0
        %v1781 = vadd.f32 0.0, %v1780
        %v1782 = vpop.f32.mrf.mxu0
        %1783 = vdwg.mxu0
        %1784 = vmatpush.bf16.msra.mxu0 0
        %1785 = vmatpush.bf16.msra.mxu0 0
        %1786 = vmatpush.bf16.msra.mxu0 0
        %1787 = vmatpush.bf16.msra.mxu0 0
        %1788 = vmatpush.bf16.msra.mxu0 0
        %1789 = vmatpush.bf16.msra.mxu0 0
        %1790 = vmatpush.bf16.msra.mxu0 0
        %1791 = vmatpush.bf16.msra.mxu0 %v1753
        %1792 = vmatmul.bf16.gmra.mxu0 %v1744
        %v1793 = vpop.f32.mrf.mxu0
        %v1794 = vadd.f32 0.0, %v1793
        %v1795 = vpop.f32.mrf.mxu0
        %1796 = vdwg.mxu0
        %1797 = vmatpush.bf16.msra.mxu0 0
        %1798 = vmatpush.bf16.msra.mxu0 0
        %1799 = vmatpush.bf16.msra.mxu0 0
        %1800 = vmatpush.bf16.msra.mxu0 0
        %1801 = vmatpush.bf16.msra.mxu0 0
        %1802 = vmatpush.bf16.msra.mxu0 0
        %1803 = vmatpush.bf16.msra.mxu0 0
        %1804 = vmatpush.bf16.msra.mxu0 %v1756
        %1805 = vmatmul.bf16.gmra.mxu0 %v1744
        %v1806 = vpop.f32.mrf.mxu0
        %v1807 = vadd.f32 0.0, %v1806
        %v1808 = vpop.f32.mrf.mxu0
        %1809 = vdwg.mxu0
        %v1810 = vadd.f32 %v1711, %v1768
        %v1811 = vadd.f32 %v1712, %v1781
        %v1812 = vadd.f32 %v1713, %v1794
        %v1813 = vadd.f32 %v1714, %v1807
        %v1814 = vld [vmem:[%s885] sm:$0xf]
        %1815 = vst [vmem:[#allocation1] ss:$4 sm:$0xff] %v1199
        %s1816 = scalar_lea.vmem [#allocation1], 32
        %1817 = vst [vmem:[%s1816] ss:$4 sm:$0xff] %v1200
        %v1818 = vld.sshfl [vmem:[#allocation1 + $0x8] sm:$0xff pattern:$0x73625140]
        %v1820 = vld.sshfl [vmem:[#allocation1 + $0x10] sm:$0xff pattern:$0x73625140]
        %v1822 = vld.sshfl [vmem:[#allocation1 + $0x18] sm:$0xff pattern:$0x73625140]
        %v1824 = vld.sshfl [vmem:[#allocation1 + $0x20] sm:$0xff pattern:$0x73625140]
        %v1826 = vld.sshfl [vmem:[#allocation1 + $0x28] sm:$0xff pattern:$0x73625140]
        %1828 = vrot.lane.b32.xlu0 %v1818, 126
        %v1829 = vpop.permute.xlu0 %1828
        %1830 = vrot.lane.b32.xlu0 %v1820, 126
        %v1831 = vpop.permute.xlu0 %1830
        %1832 = vrot.lane.b32.xlu0 %v1822, 126
        %v1833 = vpop.permute.xlu0 %1832
        %1834 = vrot.lane.b32.xlu0 %v1824, 126
        %v1835 = vpop.permute.xlu0 %1834
        %1836 = vrot.lane.b32.xlu0 %v1826, 126
        %v1837 = vpop.permute.xlu0 %1836
        %v1838 = vsel %vm809, %v1829, %v1831
        %v1839 = vsel %vm809, %v1831, %v1833
        %v1840 = vsel %vm809, %v1833, %v1835
        %v1841 = vsel %vm809, %v1835, %v1837
        %v1843 = vsel %vm271, %v1814, 0
        %v1846 = vand.u32 %v1838, %v278
        %v1849 = vand.u32 %v1839, %v278
        %v1852 = vand.u32 %v1840, %v278
        %v1855 = vand.u32 %v1841, %v278
        %1857 = vmatpush.bf16.msra.mxu0 0
        %1858 = vmatpush.bf16.msra.mxu0 0
        %1859 = vmatpush.bf16.msra.mxu0 0
        %1860 = vmatpush.bf16.msra.mxu0 0
        %1861 = vmatpush.bf16.msra.mxu0 0
        %1862 = vmatpush.bf16.msra.mxu0 0
        %1863 = vmatpush.bf16.msra.mxu0 0
        %1864 = vmatpush.bf16.msra.mxu0 %v1846
        %1865 = vmatmul.bf16.gmra.mxu0 %v1843
        %v1866 = vpop.f32.mrf.mxu0
        %v1867 = vadd.f32 0.0, %v1866
        %v1868 = vpop.f32.mrf.mxu0
        %1869 = vdwg.mxu0
        %1870 = vmatpush.bf16.msra.mxu0 0
        %1871 = vmatpush.bf16.msra.mxu0 0
        %1872 = vmatpush.bf16.msra.mxu0 0
        %1873 = vmatpush.bf16.msra.mxu0 0
        %1874 = vmatpush.bf16.msra.mxu0 0
        %1875 = vmatpush.bf16.msra.mxu0 0
        %1876 = vmatpush.bf16.msra.mxu0 0
        %1877 = vmatpush.bf16.msra.mxu0 %v1849
        %1878 = vmatmul.bf16.gmra.mxu0 %v1843
        %v1879 = vpop.f32.mrf.mxu0
        %v1880 = vadd.f32 0.0, %v1879
        %v1881 = vpop.f32.mrf.mxu0
        %1882 = vdwg.mxu0
        %1883 = vmatpush.bf16.msra.mxu0 0
        %1884 = vmatpush.bf16.msra.mxu0 0
        %1885 = vmatpush.bf16.msra.mxu0 0
        %1886 = vmatpush.bf16.msra.mxu0 0
        %1887 = vmatpush.bf16.msra.mxu0 0
        %1888 = vmatpush.bf16.msra.mxu0 0
        %1889 = vmatpush.bf16.msra.mxu0 0
        %1890 = vmatpush.bf16.msra.mxu0 %v1852
        %1891 = vmatmul.bf16.gmra.mxu0 %v1843
        %v1892 = vpop.f32.mrf.mxu0
        %v1893 = vadd.f32 0.0, %v1892
        %v1894 = vpop.f32.mrf.mxu0
        %1895 = vdwg.mxu0
        %1896 = vmatpush.bf16.msra.mxu0 0
        %1897 = vmatpush.bf16.msra.mxu0 0
        %1898 = vmatpush.bf16.msra.mxu0 0
        %1899 = vmatpush.bf16.msra.mxu0 0
        %1900 = vmatpush.bf16.msra.mxu0 0
        %1901 = vmatpush.bf16.msra.mxu0 0
        %1902 = vmatpush.bf16.msra.mxu0 0
        %1903 = vmatpush.bf16.msra.mxu0 %v1855
        %1904 = vmatmul.bf16.gmra.mxu0 %v1843
        %v1905 = vpop.f32.mrf.mxu0
        %v1906 = vadd.f32 0.0, %v1905
        %v1907 = vpop.f32.mrf.mxu0
        %1908 = vdwg.mxu0
        %v1909 = vadd.f32 %v1810, %v1867
        %v1910 = vadd.f32 %v1811, %v1880
        %v1911 = vadd.f32 %v1812, %v1893
        %v1912 = vadd.f32 %v1813, %v1906
        %v1913 = vld [vmem:[%s985] sm:$0xf]
        %1914 = vst [vmem:[#allocation1] ss:$4 sm:$0xff] %v1199
        %s1915 = scalar_lea.vmem [#allocation1], 32
        %1916 = vst [vmem:[%s1915] ss:$4 sm:$0xff] %v1200
        %v1917 = vld.sshfl [vmem:[#allocation1 + $0x10] sm:$0xff pattern:$0x73625140]
        %v1919 = vld.sshfl [vmem:[#allocation1 + $0x18] sm:$0xff pattern:$0x73625140]
        %v1921 = vld.sshfl [vmem:[#allocation1 + $0x20] sm:$0xff pattern:$0x73625140]
        %v1923 = vld.sshfl [vmem:[#allocation1 + $0x28] sm:$0xff pattern:$0x73625140]
        %v1925 = vld.sshfl [vmem:[#allocation1 + $0x30] sm:$0xff pattern:$0x73625140]
        %1927 = vrot.lane.b32.xlu0 %v1917, 126
        %v1928 = vpop.permute.xlu0 %1927
        %1929 = vrot.lane.b32.xlu0 %v1919, 126
        %v1930 = vpop.permute.xlu0 %1929
        %1931 = vrot.lane.b32.xlu0 %v1921, 126
        %v1932 = vpop.permute.xlu0 %1931
        %1933 = vrot.lane.b32.xlu0 %v1923, 126
        %v1934 = vpop.permute.xlu0 %1933
        %1935 = vrot.lane.b32.xlu0 %v1925, 126
        %v1936 = vpop.permute.xlu0 %1935
        %v1937 = vsel %vm809, %v1928, %v1930
        %v1938 = vsel %vm809, %v1930, %v1932
        %v1939 = vsel %vm809, %v1932, %v1934
        %v1940 = vsel %vm809, %v1934, %v1936
        %v1942 = vsel %vm271, %v1913, 0
        %v1945 = vand.u32 %v1937, %v278
        %v1948 = vand.u32 %v1938, %v278
        %v1951 = vand.u32 %v1939, %v278
        %v1954 = vand.u32 %v1940, %v278
        %1956 = vmatpush.bf16.msra.mxu0 0
        %1957 = vmatpush.bf16.msra.mxu0 0
        %1958 = vmatpush.bf16.msra.mxu0 0
        %1959 = vmatpush.bf16.msra.mxu0 0
        %1960 = vmatpush.bf16.msra.mxu0 0
        %1961 = vmatpush.bf16.msra.mxu0 0
        %1962 = vmatpush.bf16.msra.mxu0 0
        %1963 = vmatpush.bf16.msra.mxu0 %v1945
        %1964 = vmatmul.bf16.gmra.mxu0 %v1942
        %v1965 = vpop.f32.mrf.mxu0
        %v1966 = vadd.f32 0.0, %v1965
        %v1967 = vpop.f32.mrf.mxu0
        %1968 = vdwg.mxu0
        %1969 = vmatpush.bf16.msra.mxu0 0
        %1970 = vmatpush.bf16.msra.mxu0 0
        %1971 = vmatpush.bf16.msra.mxu0 0
        %1972 = vmatpush.bf16.msra.mxu0 0
        %1973 = vmatpush.bf16.msra.mxu0 0
        %1974 = vmatpush.bf16.msra.mxu0 0
        %1975 = vmatpush.bf16.msra.mxu0 0
        %1976 = vmatpush.bf16.msra.mxu0 %v1948
        %1977 = vmatmul.bf16.gmra.mxu0 %v1942
        %v1978 = vpop.f32.mrf.mxu0
        %v1979 = vadd.f32 0.0, %v1978
        %v1980 = vpop.f32.mrf.mxu0
        %1981 = vdwg.mxu0
        %1982 = vmatpush.bf16.msra.mxu0 0
        %1983 = vmatpush.bf16.msra.mxu0 0
        %1984 = vmatpush.bf16.msra.mxu0 0
        %1985 = vmatpush.bf16.msra.mxu0 0
        %1986 = vmatpush.bf16.msra.mxu0 0
        %1987 = vmatpush.bf16.msra.mxu0 0
        %1988 = vmatpush.bf16.msra.mxu0 0
        %1989 = vmatpush.bf16.msra.mxu0 %v1951
        %1990 = vmatmul.bf16.gmra.mxu0 %v1942
        %v1991 = vpop.f32.mrf.mxu0
        %v1992 = vadd.f32 0.0, %v1991
        %v1993 = vpop.f32.mrf.mxu0
        %1994 = vdwg.mxu0
        %1995 = vmatpush.bf16.msra.mxu0 0
        %1996 = vmatpush.bf16.msra.mxu0 0
        %1997 = vmatpush.bf16.msra.mxu0 0
        %1998 = vmatpush.bf16.msra.mxu0 0
        %1999 = vmatpush.bf16.msra.mxu0 0
        %2000 = vmatpush.bf16.msra.mxu0 0
        %2001 = vmatpush.bf16.msra.mxu0 0
        %2002 = vmatpush.bf16.msra.mxu0 %v1954
        %2003 = vmatmul.bf16.gmra.mxu0 %v1942
        %v2004 = vpop.f32.mrf.mxu0
        %v2005 = vadd.f32 0.0, %v2004
        %v2006 = vpop.f32.mrf.mxu0
        %2007 = vdwg.mxu0
        %v2008 = vadd.f32 %v1909, %v1966
        %v2009 = vadd.f32 %v1910, %v1979
        %v2010 = vadd.f32 %v1911, %v1992
        %v2011 = vadd.f32 %v1912, %v2005
        %v2012 = vadd.f32 %v2008, %v243
        %v2013 = vadd.f32 %v2009, %v243
        %v2014 = vadd.f32 %v2010, %v243
        %v2015 = vadd.f32 %v2011, %v243
        %v2016 = vmax.f32 %v2012, 0.0
        %v2017 = vmax.f32 %v2013, 0.0
        %v2018 = vmax.f32 %v2014, 0.0
        %v2019 = vmax.f32 %v2015, 0.0
        %v2020 = vpack.c.bf16 %v2016, %v2016
        %v2021 = vpack.c.bf16 %v2017, %v2017
        %v2022 = vpack.c.bf16 %v2018, %v2018
        %v2023 = vpack.c.bf16 %v2019, %v2019
        %v2025 = vsel %vm1101, %v2020, 0
        %v2028 = vsel %vm1101, %v2021, 0
        %v2031 = vsel %vm1101, %v2022, 0
        %v2034 = vsel %vm1101, %v2023, 0
        %2036 = vmatpush.bf16.msra.mxu0 0
        %2037 = vmatpush.bf16.msra.mxu0 0
        %2038 = vmatpush.bf16.msra.mxu0 0
        %2039 = vmatpush.bf16.msra.mxu0 0
        %2040 = vmatpush.bf16.msra.mxu0 0
        %2041 = vmatpush.bf16.msra.mxu0 0
        %2042 = vmatpush.bf16.msra.mxu0 0
        %2043 = vmatpush.bf16.msra.mxu0 %v2025
        %2044 = vmatmul.bf16.gmra.mxu0 %v1099
        %v2045 = vpop.f32.mrf.mxu0
        %v2046 = vadd.f32 %v249, %v2045
        %v2047 = vpop.f32.mrf.mxu0
        %2048 = vdwg.mxu0
        %2049 = vmatpush.bf16.msra.mxu0 0
        %2050 = vmatpush.bf16.msra.mxu0 0
        %2051 = vmatpush.bf16.msra.mxu0 0
        %2052 = vmatpush.bf16.msra.mxu0 0
        %2053 = vmatpush.bf16.msra.mxu0 0
        %2054 = vmatpush.bf16.msra.mxu0 0
        %2055 = vmatpush.bf16.msra.mxu0 0
        %2056 = vmatpush.bf16.msra.mxu0 %v2028
        %2057 = vmatmul.bf16.gmra.mxu0 %v1099
        %v2058 = vpop.f32.mrf.mxu0
        %v2059 = vadd.f32 %v249, %v2058
        %v2060 = vpop.f32.mrf.mxu0
        %2061 = vdwg.mxu0
        %2062 = vmatpush.bf16.msra.mxu0 0
        %2063 = vmatpush.bf16.msra.mxu0 0
        %2064 = vmatpush.bf16.msra.mxu0 0
        %2065 = vmatpush.bf16.msra.mxu0 0
        %2066 = vmatpush.bf16.msra.mxu0 0
        %2067 = vmatpush.bf16.msra.mxu0 0
        %2068 = vmatpush.bf16.msra.mxu0 0
        %2069 = vmatpush.bf16.msra.mxu0 %v2031
        %2070 = vmatmul.bf16.gmra.mxu0 %v1099
        %v2071 = vpop.f32.mrf.mxu0
        %v2072 = vadd.f32 %v249, %v2071
        %v2073 = vpop.f32.mrf.mxu0
        %2074 = vdwg.mxu0
        %2075 = vmatpush.bf16.msra.mxu0 0
        %2076 = vmatpush.bf16.msra.mxu0 0
        %2077 = vmatpush.bf16.msra.mxu0 0
        %2078 = vmatpush.bf16.msra.mxu0 0
        %2079 = vmatpush.bf16.msra.mxu0 0
        %2080 = vmatpush.bf16.msra.mxu0 0
        %2081 = vmatpush.bf16.msra.mxu0 0
        %2082 = vmatpush.bf16.msra.mxu0 %v2034
        %2083 = vmatmul.bf16.gmra.mxu0 %v1099
        %v2084 = vpop.f32.mrf.mxu0
        %v2085 = vadd.f32 %v249, %v2084
        %v2086 = vpop.f32.mrf.mxu0
        %2087 = vdwg.mxu0
        %v2088 = vsub.f32 0.0, %v2046
        %v2089 = vsub.f32 0.0, %v2059
        %v2090 = vsub.f32 0.0, %v2072
        %v2091 = vsub.f32 0.0, %v2085
        %v2092 = vmul.f32 %v2088, 1.442695
        %v2093 = vpow.pop %v2092
        %v2094 = vmul.f32 %v2089, 1.442695
        %v2095 = vpow.pop %v2094
        %v2096 = vmul.f32 %v2090, 1.442695
        %v2097 = vpow.pop %v2096
        %v2098 = vmul.f32 %v2091, 1.442695
        %v2099 = vpow.pop %v2098
        %v2100 = vadd.f32 %v2093, 1.0
        %v2101 = vadd.f32 %v2095, 1.0
        %v2102 = vadd.f32 %v2097, 1.0
        %v2103 = vadd.f32 %v2099, 1.0
        %v2104 = vrcp.pop %v2100
        %v2105 = vrcp.pop %v2101
        %v2106 = vrcp.pop %v2102
        %v2107 = vrcp.pop %v2103
        %v2108 = vmin.f32 %v2104, 1.0
        %v2109 = vmin.f32 %v2105, 1.0
        %v2110 = vmin.f32 %v2106, 1.0
        %v2111 = vmin.f32 %v2107, 1.0
        %v2112 = vpack.c.bf16 %v2109, %v2108
        %v2113 = vpack.c.bf16 %v2111, %v2110
        %2114 = vst [vmem:[%s231 + $0x10] sm:$0xff] %v2112
        %2115 = vst [vmem:[%s231 + $0x18] sm:$0xff] %v2113
        %s2116 = sand.u32 %s151, 1
        %s2117 = scalar_lea.sflag [#allocation3], %s2116
        %s2118 = sand.u32 %s151, 1
        %s2119 = smul.addr %s2118, 32
        %s2120 = scalar_lea.vmem [#allocation2], %s2119
        // Predicated region
        $region41: #{tpu_custom_call.1} parent=39 // pred_check
          %p2121 = pneg %p161
        $region42: #{tpu_custom_call.1} parent=39 // pred_check_branch
          %2123 = sbr.rel (%p2121) target = $region44
        $region43: #{tpu_custom_call.1} parent=39 // pred_region
          %s2124 = smul.u32 8, %s24
          %2126 = vsyncadd %s2117, 0
          %s2127 = smul.addr %s23, 16
          %s2128 = sadd.s32 %s2124, %s2127
          %s2129 = smul.addr %s2128, 4
          %s2130 = scalar_lea.hbm %s5, %s2129
          %s2132 = sshll.u32 %s2120, 4
          %s2133 = int_to_ptr.vmem [resolvable:$true] %s2132
          %s2134 = sshll.u32 %s2130, 4
          %s2135 = int_to_ptr.hbm [resolvable:$true] %s2134
          %2137 = dma.vmem_to_hbm [thread:$0]  %s2133, 512, %s2135, %s2117
        $region44: #{tpu_custom_call.1} parent=39 // pred_fallthru
          _
      $region40: #{tpu_custom_call.1} parent=5 // pred_fallthru
        _
      %p2138 = scmp.le.s32.totalorder 2, %s14
      // Predicated region
      $region45: #{tpu_custom_call.1} parent=5 // pred_check
        %p2139 = pneg %p2138
      $region46: #{tpu_custom_call.1} parent=5 // pred_check_branch
        %2141 = sbr.rel (%p2139) target = $region48
      $region47: #{tpu_custom_call.1} parent=5 // pred_region
        %s2142 = ssub.s32 %s14, 2
        // Predicated region
        $region49: #{tpu_custom_call.1} parent=47 // pred_check
          %p2143 = pneg %p167
        $region50: #{tpu_custom_call.1} parent=47 // pred_check_branch
          %2145 = sbr.rel (%p2143) target = $region52
        $region51: #{tpu_custom_call.1} parent=47 // pred_region
          %s2146 = sand.u32 %s152, 1
          %s2147 = scalar_lea.sflag [#allocation3], %s2146
          %s2148 = sand.u32 %s152, 1
          %s2149 = smul.addr %s2148, 32
          %s2150 = scalar_lea.vmem [#allocation2], %s2149
          %2152 = dma.done %s2147, 512
        $region52: #{tpu_custom_call.1} parent=47 // pred_fallthru
          _
      $region48: #{tpu_custom_call.1} parent=5 // pred_fallthru
        _
    $region6: #{tpu_custom_call.1} parent=1 // loop_footer
      %s18 = sadd.s32 1, %s14
    $region7: #{tpu_custom_call.1} parent=1 // loop_footer_branch
      %13 = sbr.rel target = $region3
    $region8: #{tpu_custom_call.1} parent=1 // loop_exit
      _
    %2153 = vsyncpa [#allocation3], 1
    %s2154 = scalar_lea.sflag [#allocation3], 1
    %2155 = vsyncpa %s2154, 1

</llo_original>
